<compile_context>
chip_gen: v7x
topology: tpu7x:2x2x1
jax: 0.10.0
libtpu: 0.0.40
codegen_flags: <defaults>
</compile_context>

<pallas_src>
import numpy as np
import jax
import jax.numpy as jnp
from jax.experimental import pallas as pl
from jax.experimental.pallas import tpu as pltpu

# ---- static config (shapes implied by HBFusion.__init__) --------------------
BS       = 2            # batch size (geneous.shape[0])
N_RAW    = 128          # raw points per cloud before sparse_quantize
MAX_PTS  = 128          # padded point budget after quantization (<= N_RAW)
PT_DIM   = 3            # xyz
PT_DIM_H = PT_DIM + 1   # xyz + homogeneous 1 (folds the point-conv bias)
C_FEAT   = 128          # sparse-conv output channels (MeanGeM feature dim)
NB       = 5            # number of BEV rasters per sample
H = W    = 16           # BEV spatial size
BEV_DIM  = 32           # Multi_BEV summed-feature dim; 32 + 128 = 160 = Linear in
BEV_PAD  = 128          # lane-dense internal width for the BEV branch
HEAD_IN  = BEV_DIM + C_FEAT   # 160  (nn.Linear(160, 256))
HEAD_OUT = 256
GEM_P    = 3.0          # meangem = {"p": 3.0, "eps": 1e-6}
GEM_EPS  = 1e-6
BN_EPS   = 1e-5         # BatchNorm1d default eps, training-mode batch statistics
VOXEL    = 0.6

# rows of the packed (4, HEAD_OUT) vector-parameter array
VEC_BBEV, VEC_BLIN, VEC_GAMMA, VEC_BETA = 0, 1, 2, 3


# ---------------------------------------------------------------------------
# Single fused kernel (grid-less, everything VMEM/SMEM resident):
#   pointwise sparse-conv surrogate + ReLU  ->  masked MeanGeM (p=3)
#   Multi_BEV surrogate (per-view linear + ReLU, summed over views)
#   concat-free Linear(160,256) + BatchNorm1d(256) + ReLU head
# ---------------------------------------------------------------------------
def _hbfusion_kernel(counts_ref,                      # SMEM (BS,) int32
                     pts_ref,                         # VMEM (BS*MAX_PTS, 4)
                     bev_ref,                         # VMEM (BS*NB, H*W)
                     w_pt_ref,                        # VMEM (4, C_FEAT)   [bias folded]
                     w_bev_ref,                       # VMEM (H*W, BEV_PAD)
                     w_lin_ref,                       # VMEM (BEV_PAD+C_FEAT, HEAD_OUT)
                     vec_ref,                         # VMEM (4, HEAD_OUT) [b_bev,b_lin,gamma,beta]
                     feat_ref, bev_per_ref, head_ref):
    # ---- sparse-conv surrogate: kernel-size-1 submanifold conv + ReLU -------
    # Bias is folded into the weight via the homogeneous 1-column of pts.
    f = jnp.maximum(
        jnp.dot(pts_ref[...], w_pt_ref[...], preferred_element_type=jnp.float32),
        0.0)                                          # (BS*MAX_PTS, C_FEAT)

    # ---- validity from SMEM counts: one iota + where-chain + one compare ----
    rows = jax.lax.broadcasted_iota(jnp.int32, (BS * MAX_PTS, C_FEAT), 0)
    limit = jnp.full((BS * MAX_PTS, C_FEAT),
                     counts_ref[BS - 1] + (BS - 1) * MAX_PTS, jnp.int32)
    for b in range(BS - 2, -1, -1):                   # BS static; BS=2 -> single where
        limit = jnp.where(rows < (b + 1) * MAX_PTS,
                          counts_ref[b] + b * MAX_PTS, limit)
    valid = rows < limit

    # store masked features first; downstream GeM reloads from the ref so that
    # f / valid / x / xp are never all live simultaneously (no spill traffic)
    feat_ref[...] = jnp.where(valid, f, 0.0)

    # ---- MeanGeM (p = 3): cube on the VPU; per-batch sums via a tiny
    #      selection-matrix matmul (no unaligned sublane slices, no concat) ----
    fm = feat_ref[...]
    x = jnp.maximum(fm, GEM_EPS)
    xp = jnp.where(valid, x * x * x, 0.0)             # (BS*MAX_PTS, C_FEAT)

    br = jax.lax.broadcasted_iota(jnp.int32, (BS, BS * MAX_PTS), 0)
    bc = jax.lax.broadcasted_iota(jnp.int32, (BS, BS * MAX_PTS), 1)
    sel_pt = ((bc >= br * MAX_PTS) & (bc < (br + 1) * MAX_PTS)).astype(jnp.float32)
    sums = jnp.dot(sel_pt, xp, preferred_element_type=jnp.float32)    # (BS, C_FEAT)

    # per-batch counts broadcast straight from SMEM (replaces a (2,256)x(256,128) dot)
    bidx = jax.lax.broadcasted_iota(jnp.int32, (BS, C_FEAT), 0)
    cnts = jnp.full((BS, C_FEAT), counts_ref[BS - 1], jnp.int32)
    for b in range(BS - 2, -1, -1):
        cnts = jnp.where(bidx == b, counts_ref[b], cnts)
    mean = sums / jnp.maximum(cnts.astype(jnp.float32), 1.0)          # cnt==0 -> safe
    mean = jnp.maximum(mean, GEM_EPS ** GEM_P)        # keep log() well-defined
    pooled = jnp.exp(jnp.log(mean) * (1.0 / GEM_P))   # cube root, only (BS,128) EUP ops

    # ---- Multi_BEV surrogate: per-view linear + ReLU, summed over views -----
    # Lane-dense: weights/bias padded to 128 lanes -> unmasked (10,128) store.
    b_bev = vec_ref[VEC_BBEV:VEC_BBEV + 1, :BEV_PAD]                  # (1, BEV_PAD)
    bev = jnp.maximum(
        jnp.dot(bev_ref[...], w_bev_ref[...], preferred_element_type=jnp.float32)
        + b_bev, 0.0)                                                  # (BS*NB, BEV_PAD)
    bev_per_ref[...] = bev
    vr = jax.lax.broadcasted_iota(jnp.int32, (BS, BS * NB), 0)
    vc = jax.lax.broadcasted_iota(jnp.int32, (BS, BS * NB), 1)
    sel_bev = ((vc >= vr * NB) & (vc < (vr + 1) * NB)).astype(jnp.float32)
    bev_sum = jnp.dot(sel_bev, bev, preferred_element_type=jnp.float32)  # (BS, BEV_PAD)

    # ---- head: concat-free Linear(160,256) on packed weight + BN + ReLU -----
    # Concat order [bev_sum_feature, batch_feats]: rows [0:BEV_PAD) act on the
    # (zero-padded) BEV features, rows [BEV_PAD:) on the GeM-pooled features.
    y = (jnp.dot(bev_sum, w_lin_ref[:BEV_PAD, :],
                 preferred_element_type=jnp.float32)
         + jnp.dot(pooled, w_lin_ref[BEV_PAD:BEV_PAD + C_FEAT, :],
                   preferred_element_type=jnp.float32)
         + vec_ref[VEC_BLIN:VEC_BLIN + 1, :])                          # (BS, HEAD_OUT)
    # BatchNorm1d in training mode: batch statistics, biased variance.
    mu  = jnp.mean(y, axis=0, keepdims=True)
    var = jnp.mean((y - mu) * (y - mu), axis=0, keepdims=True)
    yn  = (y - mu) * jax.lax.rsqrt(var + BN_EPS)
    head_ref[...] = jnp.maximum(
        yn * vec_ref[VEC_GAMMA:VEC_GAMMA + 1, :] + vec_ref[VEC_BETA:VEC_BETA + 1, :],
        0.0)


def hbfusion_fused(counts, pts_h, bev_flat, params):
    """Single grid-less pallas_call for the whole forward (VMEM/SMEM resident)."""
    vmem = pltpu.MemorySpace.VMEM
    smem = pltpu.MemorySpace.SMEM
    return pl.pallas_call(
        _hbfusion_kernel,
        out_shape=(
            jax.ShapeDtypeStruct((BS * MAX_PTS, C_FEAT), jnp.float32),
            jax.ShapeDtypeStruct((BS * NB, BEV_PAD), jnp.float32),
            jax.ShapeDtypeStruct((BS, HEAD_OUT), jnp.float32),
        ),
        in_specs=[
            pl.BlockSpec(memory_space=smem),    # counts (BS,) int32
            pl.BlockSpec(memory_space=vmem),    # pts_h
            pl.BlockSpec(memory_space=vmem),    # bev_flat
            pl.BlockSpec(memory_space=vmem),    # w_pt_h
            pl.BlockSpec(memory_space=vmem),    # w_bev_pad
            pl.BlockSpec(memory_space=vmem),    # w_lin_pack
            pl.BlockSpec(memory_space=vmem),    # vec_pack
        ],
        out_specs=(
            pl.BlockSpec(memory_space=vmem),    # feat (BS*MAX_PTS, C_FEAT)
            pl.BlockSpec(memory_space=vmem),    # bev per-view (BS*NB, BEV_PAD)
            pl.BlockSpec(memory_space=vmem),    # head (BS, HEAD_OUT)
        ),
        # Single-core, single invocation: with BS=2 and a BN that needs both batch
        # rows, splitting across v7x's two TensorCores would be a regression.
    )(counts, pts_h, bev_flat,
      params["w_pt_h"], params["w_bev_pad"], params["w_lin_pack"], params["vec_pack"])


# ---------------------------------------------------------------------------
# Host-side glue: voxel quantization (mirrors sparse_quantize(pc, 0.6, return_index=True))
# ---------------------------------------------------------------------------
def sparse_quantize_np(pc, voxel_size):
    vox = np.floor(pc / voxel_size).astype(np.int32)
    _, idx = np.unique(vox, axis=0, return_index=True)
    idx = np.sort(idx)
    # TODO(synk): torchsparse uses a hash-based dedup whose representative-point
    # order may differ; np.unique keeps the first occurrence per voxel.
    return vox[idx], idx


# ---------------------------------------------------------------------------
# Full forward (mirrors HBFusion.forward)
#
# `coords_host` is a host-side numpy array: the voxel dedup runs entirely on the
# host and only the padded points + int32 counts are uploaded -> no D2H sync /
# device round-trip inside the forward.
# ---------------------------------------------------------------------------
def hb_fusion_forward(coords_host, feats, geneous, bevs, params):
    del feats  # reference forward re-uses the quantized coords as the features
    bs = int(geneous.shape[0])

    coords_np = np.asarray(coords_host, dtype=np.float32)
    pts_pad   = np.zeros((bs * MAX_PTS, PT_DIM_H), np.float32)
    pts_pad[:, PT_DIM] = 1.0                       # homogeneous column (folds b_pt)
    counts_np = np.zeros((bs,), np.int32)
    for ndx in range(bs):
        _, indices = sparse_quantize_np(coords_np[ndx], VOXEL)
        sel = coords_np[ndx][indices]
        n = min(sel.shape[0], MAX_PTS)
        pts_pad[ndx * MAX_PTS: ndx * MAX_PTS + n, :PT_DIM] = sel[:n]
        counts_np[ndx] = n

    pts_j    = jnp.asarray(pts_pad)                      # (BS*MAX_PTS, 4)
    counts_j = jnp.asarray(counts_np)                    # (BS,) int32 -> SMEM
    bev_flat = bevs.astype(jnp.float32).reshape(bs * NB, H * W)

    # TODO(synk): true torchsparse 3D sparse convolution (neighbor gather/scatter
    # over a voxel hash map) has no clean Pallas equivalent; surrogate is a
    # kernel-size-1 submanifold conv (pointwise linear + ReLU).
    # TODO(synk): Multi_BEV internals are not defined in the reference module;
    # implemented as flatten(H*W) -> linear -> ReLU per view, summed over views.
    feat_flat, bev_per_flat, batch_feats = hbfusion_fused(
        counts_j, pts_j, bev_flat, params)

    feat            = feat_flat.reshape(bs, MAX_PTS, C_FEAT)            # free reshape
    bev_per_feature = bev_per_flat[:, :BEV_DIM].reshape(bs, NB, BEV_DIM)  # strip lane pad
    pts_dev         = pts_j[:, :PT_DIM].reshape(bs, MAX_PTS, PT_DIM)

    # Per-item lists (module semantics); counts are host ints -> static-shape slices.
    pc_list = [pts_dev[ndx, :int(counts_np[ndx])] for ndx in range(bs)]
    feature = [feat[ndx, :int(counts_np[ndx])] for ndx in range(bs)]
    return pc_list, feature, batch_feats, bev_per_feature


# ---------------------------------------------------------------------------
# Deterministic parameter init (synthetic, no checkpoint) with packing:
#   w_pt_h     (4, 128)    : point-conv weight rows 0-2, bias row 3
#   w_bev_pad  (256, 128)  : BEV per-view weight, lanes 32..127 zero
#   w_lin_pack (256, 256)  : rows 0-31 = Linear weight for bev_sum (rows 32-127 zero
#                            padding), rows 128-255 = Linear weight for GeM features
#   vec_pack   (4, 256)    : [b_bev(pad), b_lin, bn_gamma, bn_beta]
# ---------------------------------------------------------------------------
def init_params(key):
    ks = jax.random.split(key, 6)
    nrm = lambda k, shape, scale: jax.random.normal(k, shape, jnp.float32) * scale

    w_pt = nrm(ks[0], (PT_DIM, C_FEAT), 0.5)
    b_pt = nrm(ks[1], (1, C_FEAT), 0.1)
    w_pt_h = jnp.concatenate([w_pt, b_pt], axis=0)                       # (4, 128)

    w_bev = nrm(ks[2], (H * W, BEV_DIM), 1.0 / np.sqrt(H * W))
    w_bev_pad = jnp.pad(w_bev, ((0, 0), (0, BEV_PAD - BEV_DIM)))         # (256, 128)
    b_bev = jnp.zeros((1, BEV_DIM), jnp.float32)
    b_bev_pad = jnp.pad(b_bev, ((0, 0), (0, HEAD_OUT - BEV_DIM)))        # (1, 256)

    # Linear(160, 256); concat order in the reference is [bev_sum, gem] so the
    # first BEV_DIM rows act on the BEV features, the remaining C_FEAT on GeM.
    w_lin = nrm(ks[3], (HEAD_IN, HEAD_OUT), 1.0 / np.sqrt(HEAD_IN))
    w_lin_pack = jnp.concatenate([
        jnp.pad(w_lin[:BEV_DIM], ((0, BEV_PAD - BEV_DIM), (0, 0))),      # (128, 256)
        w_lin[BEV_DIM:],                                                 # (128, 256)
    ], axis=0)                                                           # (256, 256)

    b_lin = nrm(ks[4], (1, HEAD_OUT), 0.01)
    bn_gamma = (jnp.ones((1, HEAD_OUT), jnp.float32)
                + 0.1 * jax.random.normal(ks[5], (1, HEAD_OUT), jnp.float32))
    bn_beta = jnp.zeros((1, HEAD_OUT), jnp.float32)
    vec_pack = jnp.concatenate([b_bev_pad, b_lin, bn_gamma, bn_beta], axis=0)  # (4, 256)

    return dict(w_pt_h=w_pt_h, w_bev_pad=w_bev_pad,
                w_lin_pack=w_lin_pack, vec_pack=vec_pack)


if __name__ == "__main__":
    root = jax.random.PRNGKey(0)
    k_par, k_coord, k_feat, k_bev = jax.random.split(root, 4)
    params = init_params(k_par)

    # inputs (small, consistent with the forward's expectations)
    coords  = jax.random.uniform(k_coord, (BS, N_RAW, PT_DIM),
                                 jnp.float32, minval=0.0, maxval=8.0)
    feats   = jax.random.normal(k_feat, (BS, N_RAW, PT_DIM), jnp.float32)
    geneous = jnp.array([0, 1], dtype=jnp.int32)            # 'ground', 'aerial'
    bevs    = jax.random.uniform(k_bev, (BS, NB, H, W), jnp.float32)

    # The voxel dedup needs host coords; pull them once during input construction
    # so the forward itself never does a device round-trip.
    coords_host = np.asarray(jax.device_get(coords), dtype=np.float32)

    pc_list, feature, batch_feats, bev_per_feature = hb_fusion_forward(
        coords_host, feats, geneous, bevs, params)

    jax.block_until_ready(batch_feats)
    jax.block_until_ready(bev_per_feature)
    for f in feature:
        jax.block_until_ready(f)

    assert batch_feats.shape == (BS, HEAD_OUT)
    assert bev_per_feature.shape == (BS, NB, BEV_DIM)
    assert len(pc_list) == BS and len(feature) == BS
    assert all(f.shape[1] == C_FEAT for f in feature)
    assert bool(jnp.all(jnp.isfinite(batch_feats)))

    print("KERNEL_OK")
</pallas_src>

<mosaic_0001>
module attributes {stable_mosaic.version = 11 : i64} {
  func.func @_hbfusion_kernel(%arg0: memref<2xi32, #tpu.memory_space<smem>>, %arg1: memref<256x4xf32, #tpu.memory_space<vmem>>, %arg2: memref<10x256xf32, #tpu.memory_space<vmem>>, %arg3: memref<4x128xf32, #tpu.memory_space<vmem>>, %arg4: memref<256x128xf32, #tpu.memory_space<vmem>>, %arg5: memref<256x256xf32, #tpu.memory_space<vmem>>, %arg6: memref<4x256xf32, #tpu.memory_space<vmem>>, %arg7: memref<256x128xf32, #tpu.memory_space<vmem>>, %arg8: memref<10x128xf32, #tpu.memory_space<vmem>>, %arg9: memref<2x256xf32, #tpu.memory_space<vmem>>) attributes {dimension_semantics = [], scalar_prefetch = 0 : i64, scratch_operands = 0 : i64, tpu.core_type = #tpu.core_type<tc>} {
    %c0 = arith.constant 0 : index
    %c0_0 = arith.constant 0 : index
    %0 = vector.load %arg1[%c0, %c0_0] : memref<256x4xf32, #tpu.memory_space<vmem>>, vector<256x4xf32>
    %c0_1 = arith.constant 0 : index
    %c0_2 = arith.constant 0 : index
    %1 = vector.load %arg3[%c0_1, %c0_2] : memref<4x128xf32, #tpu.memory_space<vmem>>, vector<4x128xf32>
    %cst = arith.constant dense<0.000000e+00> : vector<256x128xf32>
    %2 = tpu.matmul %0, %1, %cst {dimension_numbers = #tpu.dot_dimension_numbers<[1], [0], [0], [1], [0, 0, 1, 1], [], []>} : vector<256x4xf32>, vector<4x128xf32>, vector<256x128xf32> -> vector<256x128xf32>
    %cst_3 = arith.constant 0.000000e+00 : f32
    %3 = vector.broadcast %cst_3 : f32 to vector<256x128xf32>
    %4 = arith.maximumf %2, %3 : vector<256x128xf32>
    %5 = tpu.iota {dimensions = array<i32: 0>} : vector<256x128xi32>
    %c1 = arith.constant 1 : index
    %6 = memref.load %arg0[%c1] : memref<2xi32, #tpu.memory_space<smem>>
    %c128_i32 = arith.constant 128 : i32
    %7 = arith.addi %6, %c128_i32 : i32
    %8 = vector.broadcast %7 : i32 to vector<256x128xi32>
    %c128_i32_4 = arith.constant 128 : i32
    %9 = vector.broadcast %c128_i32_4 : i32 to vector<256x128xi32>
    %10 = arith.cmpi slt, %5, %9 : vector<256x128xi32>
    %c0_5 = arith.constant 0 : index
    %11 = memref.load %arg0[%c0_5] : memref<2xi32, #tpu.memory_space<smem>>
    %c0_i32 = arith.constant 0 : i32
    %12 = arith.addi %11, %c0_i32 : i32
    %13 = vector.broadcast %12 : i32 to vector<256x128xi32>
    %14 = arith.select %10, %13, %8 : vector<256x128xi1>, vector<256x128xi32>
    %15 = arith.cmpi slt, %5, %14 : vector<256x128xi32>
    %cst_6 = arith.constant 0.000000e+00 : f32
    %16 = vector.broadcast %cst_6 : f32 to vector<256x128xf32>
    %17 = arith.select %15, %4, %16 : vector<256x128xi1>, vector<256x128xf32>
    %c0_7 = arith.constant 0 : index
    %c0_8 = arith.constant 0 : index
    %18 = vector.load %arg7[%c0_7, %c0_8] : memref<256x128xf32, #tpu.memory_space<vmem>>, vector<256x128xf32>
    tpu.vector_store %arg7[%c0_7, %c0_8], %17 {strides = array<i32>} : memref<256x128xf32, #tpu.memory_space<vmem>>, vector<256x128xf32>,
    %c0_9 = arith.constant 0 : index
    %c0_10 = arith.constant 0 : index
    %19 = vector.load %arg7[%c0_9, %c0_10] : memref<256x128xf32, #tpu.memory_space<vmem>>, vector<256x128xf32>
    %cst_11 = arith.constant 9.99999997E-7 : f32
    %20 = vector.broadcast %cst_11 : f32 to vector<256x128xf32>
    %21 = arith.maximumf %19, %20 : vector<256x128xf32>
    %22 = arith.mulf %21, %21 : vector<256x128xf32>
    %23 = arith.mulf %22, %21 : vector<256x128xf32>
    %cst_12 = arith.constant 0.000000e+00 : f32
    %24 = vector.broadcast %cst_12 : f32 to vector<256x128xf32>
    %25 = arith.select %15, %23, %24 : vector<256x128xi1>, vector<256x128xf32>
    %26 = tpu.iota {dimensions = array<i32: 0>} : vector<2x256xi32>
    %27 = tpu.iota {dimensions = array<i32: 1>} : vector<2x256xi32>
    %c128_i32_13 = arith.constant 128 : i32
    %28 = vector.broadcast %c128_i32_13 : i32 to vector<2x256xi32>
    %29 = arith.muli %26, %28 : vector<2x256xi32>
    %30 = arith.cmpi sge, %27, %29 : vector<2x256xi32>
    %c1_i32 = arith.constant 1 : i32
    %31 = vector.broadcast %c1_i32 : i32 to vector<2x256xi32>
    %32 = arith.addi %26, %31 : vector<2x256xi32>
    %c128_i32_14 = arith.constant 128 : i32
    %33 = vector.broadcast %c128_i32_14 : i32 to vector<2x256xi32>
    %34 = arith.muli %32, %33 : vector<2x256xi32>
    %35 = arith.cmpi slt, %27, %34 : vector<2x256xi32>
    %36 = arith.andi %30, %35 : vector<2x256xi1>
    %37 = arith.extui %36 : vector<2x256xi1> to vector<2x256xi32>
    %38 = arith.sitofp %37 : vector<2x256xi32> to vector<2x256xf32>
    %cst_15 = arith.constant dense<0.000000e+00> : vector<2x128xf32>
    %39 = tpu.matmul %38, %25, %cst_15 {dimension_numbers = #tpu.dot_dimension_numbers<[1], [0], [0], [1], [0, 0, 1, 1], [], []>} : vector<2x256xf32>, vector<256x128xf32>, vector<2x128xf32> -> vector<2x128xf32>
    %40 = tpu.iota {dimensions = array<i32: 0>} : vector<2x128xi32>
    %c1_16 = arith.constant 1 : index
    %41 = memref.load %arg0[%c1_16] : memref<2xi32, #tpu.memory_space<smem>>
    %42 = vector.broadcast %41 : i32 to vector<2x128xi32>
    %c0_i32_17 = arith.constant 0 : i32
    %43 = vector.broadcast %c0_i32_17 : i32 to vector<2x128xi32>
    %44 = arith.cmpi eq, %40, %43 : vector<2x128xi32>
    %c0_18 = arith.constant 0 : index
    %45 = memref.load %arg0[%c0_18] : memref<2xi32, #tpu.memory_space<smem>>
    %46 = vector.broadcast %45 : i32 to vector<2x128xi32>
    %47 = arith.select %44, %46, %42 : vector<2x128xi1>, vector<2x128xi32>
    %48 = arith.sitofp %47 : vector<2x128xi32> to vector<2x128xf32>
    %cst_19 = arith.constant 1.000000e+00 : f32
    %49 = vector.broadcast %cst_19 : f32 to vector<2x128xf32>
    %50 = arith.maximumf %48, %49 : vector<2x128xf32>
    %51 = arith.divf %39, %50 : vector<2x128xf32>
    %cst_20 = arith.constant 1.000000e-18 : f32
    %52 = vector.broadcast %cst_20 : f32 to vector<2x128xf32>
    %53 = arith.maximumf %51, %52 : vector<2x128xf32>
    %54 = math.log %53 : vector<2x128xf32>
    %cst_21 = arith.constant 0.333333343 : f32
    %55 = vector.broadcast %cst_21 : f32 to vector<2x128xf32>
    %56 = arith.mulf %54, %55 : vector<2x128xf32>
    %57 = math.exp %56 : vector<2x128xf32>
    %c0_22 = arith.constant 0 : index
    %c0_23 = arith.constant 0 : index
    %58 = vector.load %arg6[%c0_22, %c0_23] : memref<4x256xf32, #tpu.memory_space<vmem>>, vector<1x128xf32>
    %c0_24 = arith.constant 0 : index
    %c0_25 = arith.constant 0 : index
    %59 = vector.load %arg2[%c0_24, %c0_25] : memref<10x256xf32, #tpu.memory_space<vmem>>, vector<10x256xf32>
    %c0_26 = arith.constant 0 : index
    %c0_27 = arith.constant 0 : index
    %60 = vector.load %arg4[%c0_26, %c0_27] : memref<256x128xf32, #tpu.memory_space<vmem>>, vector<256x128xf32>
    %cst_28 = arith.constant dense<0.000000e+00> : vector<10x128xf32>
    %61 = tpu.matmul %59, %60, %cst_28 {dimension_numbers = #tpu.dot_dimension_numbers<[1], [0], [0], [1], [0, 0, 1, 1], [], []>} : vector<10x256xf32>, vector<256x128xf32>, vector<10x128xf32> -> vector<10x128xf32>
    %62 = vector.broadcast %58 : vector<1x128xf32> to vector<10x128xf32>
    %63 = arith.addf %61, %62 : vector<10x128xf32>
    %cst_29 = arith.constant 0.000000e+00 : f32
    %64 = vector.broadcast %cst_29 : f32 to vector<10x128xf32>
    %65 = arith.maximumf %63, %64 : vector<10x128xf32>
    %c0_30 = arith.constant 0 : index
    %c0_31 = arith.constant 0 : index
    %66 = vector.load %arg8[%c0_30, %c0_31] : memref<10x128xf32, #tpu.memory_space<vmem>>, vector<10x128xf32>
    tpu.vector_store %arg8[%c0_30, %c0_31], %65 {strides = array<i32>} : memref<10x128xf32, #tpu.memory_space<vmem>>, vector<10x128xf32>,
    %67 = tpu.iota {dimensions = array<i32: 0>} : vector<2x10xi32>
    %68 = tpu.iota {dimensions = array<i32: 1>} : vector<2x10xi32>
    %c5_i32 = arith.constant 5 : i32
    %69 = vector.broadcast %c5_i32 : i32 to vector<2x10xi32>
    %70 = arith.muli %67, %69 : vector<2x10xi32>
    %71 = arith.cmpi sge, %68, %70 : vector<2x10xi32>
    %c1_i32_32 = arith.constant 1 : i32
    %72 = vector.broadcast %c1_i32_32 : i32 to vector<2x10xi32>
    %73 = arith.addi %67, %72 : vector<2x10xi32>
    %c5_i32_33 = arith.constant 5 : i32
    %74 = vector.broadcast %c5_i32_33 : i32 to vector<2x10xi32>
    %75 = arith.muli %73, %74 : vector<2x10xi32>
    %76 = arith.cmpi slt, %68, %75 : vector<2x10xi32>
    %77 = arith.andi %71, %76 : vector<2x10xi1>
    %78 = arith.extui %77 : vector<2x10xi1> to vector<2x10xi32>
    %79 = arith.sitofp %78 : vector<2x10xi32> to vector<2x10xf32>
    %cst_34 = arith.constant dense<0.000000e+00> : vector<2x128xf32>
    %80 = tpu.matmul %79, %65, %cst_34 {dimension_numbers = #tpu.dot_dimension_numbers<[1], [0], [0], [1], [0, 0, 1, 1], [], []>} : vector<2x10xf32>, vector<10x128xf32>, vector<2x128xf32> -> vector<2x128xf32>
    %c0_35 = arith.constant 0 : index
    %c0_36 = arith.constant 0 : index
    %81 = vector.load %arg5[%c0_35, %c0_36] : memref<256x256xf32, #tpu.memory_space<vmem>>, vector<128x256xf32>
    %cst_37 = arith.constant dense<0.000000e+00> : vector<2x256xf32>
    %82 = tpu.matmul %80, %81, %cst_37 {dimension_numbers = #tpu.dot_dimension_numbers<[1], [0], [0], [1], [0, 0, 1, 1], [], []>} : vector<2x128xf32>, vector<128x256xf32>, vector<2x256xf32> -> vector<2x256xf32>
    %c128 = arith.constant 128 : index
    %c0_38 = arith.constant 0 : index
    %83 = vector.load %arg5[%c128, %c0_38] : memref<256x256xf32, #tpu.memory_space<vmem>>, vector<128x256xf32>
    %cst_39 = arith.constant dense<0.000000e+00> : vector<2x256xf32>
    %84 = tpu.matmul %57, %83, %cst_39 {dimension_numbers = #tpu.dot_dimension_numbers<[1], [0], [0], [1], [0, 0, 1, 1], [], []>} : vector<2x128xf32>, vector<128x256xf32>, vector<2x256xf32> -> vector<2x256xf32>
    %85 = arith.addf %82, %84 : vector<2x256xf32>
    %c1_40 = arith.constant 1 : index
    %c0_41 = arith.constant 0 : index
    %86 = vector.load %arg6[%c1_40, %c0_41] : memref<4x256xf32, #tpu.memory_space<vmem>>, vector<1x256xf32>
    %87 = vector.broadcast %86 : vector<1x256xf32> to vector<2x256xf32>
    %88 = arith.addf %85, %87 : vector<2x256xf32>
    %cst_42 = arith.constant dense<0.000000e+00> : vector<256xf32>
    %89 = vector.multi_reduction <add>, %88, %cst_42 [0] : vector<2x256xf32> to vector<256xf32>
    %90 = vector.shape_cast %89 : vector<256xf32> to vector<1x256xf32>
    %cst_43 = arith.constant 2.000000e+00 : f32
    %91 = vector.broadcast %cst_43 : f32 to vector<1x256xf32>
    %92 = arith.divf %90, %91 : vector<1x256xf32>
    %93 = vector.broadcast %92 : vector<1x256xf32> to vector<2x256xf32>
    %94 = arith.subf %88, %93 : vector<2x256xf32>
    %95 = vector.broadcast %92 : vector<1x256xf32> to vector<2x256xf32>
    %96 = arith.subf %88, %95 : vector<2x256xf32>
    %97 = arith.mulf %94, %96 : vector<2x256xf32>
    %cst_44 = arith.constant dense<0.000000e+00> : vector<256xf32>
    %98 = vector.multi_reduction <add>, %97, %cst_44 [0] : vector<2x256xf32> to vector<256xf32>
    %99 = vector.shape_cast %98 : vector<256xf32> to vector<1x256xf32>
    %cst_45 = arith.constant 2.000000e+00 : f32
    %100 = vector.broadcast %cst_45 : f32 to vector<1x256xf32>
    %101 = arith.divf %99, %100 : vector<1x256xf32>
    %102 = vector.broadcast %92 : vector<1x256xf32> to vector<2x256xf32>
    %103 = arith.subf %88, %102 : vector<2x256xf32>
    %cst_46 = arith.constant 9.99999974E-6 : f32
    %104 = vector.broadcast %cst_46 : f32 to vector<1x256xf32>
    %105 = arith.addf %101, %104 : vector<1x256xf32>
    %106 = math.rsqrt %105 : vector<1x256xf32>
    %107 = vector.broadcast %106 : vector<1x256xf32> to vector<2x256xf32>
    %108 = arith.mulf %103, %107 : vector<2x256xf32>
    %c2 = arith.constant 2 : index
    %c0_47 = arith.constant 0 : index
    %109 = vector.load %arg6[%c2, %c0_47] : memref<4x256xf32, #tpu.memory_space<vmem>>, vector<1x256xf32>
    %110 = vector.broadcast %109 : vector<1x256xf32> to vector<2x256xf32>
    %111 = arith.mulf %108, %110 : vector<2x256xf32>
    %c3 = arith.constant 3 : index
    %c0_48 = arith.constant 0 : index
    %112 = vector.load %arg6[%c3, %c0_48] : memref<4x256xf32, #tpu.memory_space<vmem>>, vector<1x256xf32>
    %113 = vector.broadcast %112 : vector<1x256xf32> to vector<2x256xf32>
    %114 = arith.addf %111, %113 : vector<2x256xf32>
    %cst_49 = arith.constant 0.000000e+00 : f32
    %115 = vector.broadcast %cst_49 : f32 to vector<2x256xf32>
    %116 = arith.maximumf %114, %115 : vector<2x256xf32>
    %c0_50 = arith.constant 0 : index
    %c0_51 = arith.constant 0 : index
    %117 = vector.load %arg9[%c0_50, %c0_51] : memref<2x256xf32, #tpu.memory_space<vmem>>, vector<2x256xf32>
    tpu.vector_store %arg9[%c0_50, %c0_51], %116 {strides = array<i32>} : memref<2x256xf32, #tpu.memory_space<vmem>>, vector<2x256xf32>,
    return
  }
}

</mosaic_0001>

<llo_original>
// kernel: tpu_custom_call.1
$region0: #{tpu_custom_call.1}
  #allocation0 [shape = 'u32[]', space=smem, size = 0x4, offset = 0x4, fixed_abs, tag = 'smem constant byte address 0x4 - core index']
  #allocation1 [shape = 'u32[144,128]{1,0:T(1,128)}', space=vmem, size = 0x12000, scoped, tag = 'internal scratch']
  %s0 = inlined_call_operand.vmem [shape: s32[2], index: 0, kind: input, shape index: {}]
  %s1 = inlined_call_operand.vmem [shape: f32[256,4], index: 1, kind: input, shape index: {}]
  %s2 = inlined_call_operand.hbm [shape: f32[10,256], index: 2, kind: input, shape index: {}]
  %s3 = inlined_call_operand.vmem [shape: f32[4,128], index: 3, kind: input, shape index: {}]
  %s4 = inlined_call_operand.vmem [shape: f32[256,128], index: 4, kind: input, shape index: {}]
  %s5 = inlined_call_operand.hbm [shape: f32[256,256], index: 5, kind: input, shape index: {}]
  %s6 = inlined_call_operand.vmem [shape: f32[4,256], index: 6, kind: input, shape index: {}]
  %s7 = inlined_call_operand.hbm [shape: f32[256,128], index: 7, kind: output, shape index: {0}]
  %s8 = inlined_call_operand.hbm [shape: f32[10,128], index: 8, kind: output, shape index: {1}]
  %s9 = inlined_call_operand.hbm [shape: f32[2,256], index: 9, kind: output, shape index: {2}]
  %10 = xla_tuple %s7, %s8, %s9
  %s11 = sld [smem:[#allocation0]]
  $region66: #{tpu_custom_call.1} parent=0
    _
  %s13 = ssub.s32 1, %s11
  %s14 = scalar_select 0, %s13, %s11
  $region1: #{tpu_custom_call.1} parent=0
    #allocation2 [shape = 'u8[512]{0}', space=smem, size = 0x200, scoped, tag = 'input window, operand 0, single buffered']
    #allocation3 [shape = 's32[1]{0}', space=sflag, size = 0x4, scoped, tag = 'scoped memory for tpu_custom_call.1']
    #allocation4 [shape = 's32[1]{0}', space=sflag, size = 0x4, scoped, tag = 'scoped memory for tpu_custom_call.1']
    #allocation5 [shape = 's32[1]{0}', space=sflag, size = 0x4, scoped, tag = 'scoped memory for tpu_custom_call.1']
    #allocation6 [shape = 'u8[16384]{0}', space=vmem, size = 0x4000, scoped, tag = 'input window, operand 2, single buffered']
    #allocation7 [shape = 'u8[262144]{0}', space=vmem, size = 0x40000, scoped, tag = 'input window, operand 5, single buffered']
    #allocation8 [shape = 's32[1]{0}', space=sflag, size = 0x4, scoped, tag = 'scoped memory for tpu_custom_call.1']
    #allocation9 [shape = 'u8[131072]{0}', space=vmem, size = 0x20000, scoped, tag = 'output window, operand 0, single buffered']
    #allocation10 [shape = 'u8[8192]{0}', space=vmem, size = 0x2000, scoped, tag = 'output window, operand 1, single buffered']
    #allocation11 [shape = 's32[1]{0}', space=sflag, size = 0x4, scoped, tag = 'scoped memory for tpu_custom_call.1']
    #allocation12 [shape = 'u8[2048]{0}', space=vmem, size = 0x800, scoped, tag = 'output window, operand 2, single buffered']
    %15 = vsyncpa [#allocation5], 0
    %16 = vsyncpa [#allocation3], 0
    %17 = vsyncpa [#allocation8], 0
    %18 = vsyncpa [#allocation4], 0
    %19 = vsyncpa [#allocation11], 0
    // Predicated region
    $region2: #{tpu_custom_call.1} parent=1 // pred_check
      _
    $region3: #{tpu_custom_call.1} parent=1 // pred_check_branch
      %21 = sbr.rel (0) target = $region5
    $region4: #{tpu_custom_call.1} parent=1 // pred_region
      %s23 = ssub.s32 16, 16
      %24 = vsyncadd [#allocation5], %s23
      %s26 = sshll.u32 %s0, 4
      %s27 = int_to_ptr.vmem [resolvable:$true] %s26
      %29 = dma.vmem_to_smem %s27, 16, [#allocation2], [#allocation5]
    $region5: #{tpu_custom_call.1} parent=1 // pred_fallthru
      _
    // Predicated region
    $region6: #{tpu_custom_call.1} parent=1 // pred_check
      _
    $region7: #{tpu_custom_call.1} parent=1 // pred_check_branch
      %31 = sbr.rel (0) target = $region9
    $region8: #{tpu_custom_call.1} parent=1 // pred_region
      _
    $region9: #{tpu_custom_call.1} parent=1 // pred_fallthru
      _
    // Predicated region
    $region10: #{tpu_custom_call.1} parent=1 // pred_check
      _
    $region11: #{tpu_custom_call.1} parent=1 // pred_check_branch
      %33 = sbr.rel (0) target = $region13
    $region12: #{tpu_custom_call.1} parent=1 // pred_region
      %s35 = ssub.s32 512, 512
      %36 = vsyncadd [#allocation3], %s35
      %s37 = sshll.u32 [#allocation6], 4
      %s38 = int_to_ptr.vmem [resolvable:$true] %s37
      %43 = dma.hbm_to_vmem [thread:$0]  %s2, 512, %s38, [#allocation3], 256, 256, 16
    $region13: #{tpu_custom_call.1} parent=1 // pred_fallthru
      _
    // Predicated region
    $region14: #{tpu_custom_call.1} parent=1 // pred_check
      _
    $region15: #{tpu_custom_call.1} parent=1 // pred_check_branch
      %45 = sbr.rel (0) target = $region17
    $region16: #{tpu_custom_call.1} parent=1 // pred_region
      _
    $region17: #{tpu_custom_call.1} parent=1 // pred_fallthru
      _
    // Predicated region
    $region18: #{tpu_custom_call.1} parent=1 // pred_check
      _
    $region19: #{tpu_custom_call.1} parent=1 // pred_check_branch
      %47 = sbr.rel (0) target = $region21
    $region20: #{tpu_custom_call.1} parent=1 // pred_region
      _
    $region21: #{tpu_custom_call.1} parent=1 // pred_fallthru
      _
    // Predicated region
    $region22: #{tpu_custom_call.1} parent=1 // pred_check
      _
    $region23: #{tpu_custom_call.1} parent=1 // pred_check_branch
      %49 = sbr.rel (0) target = $region25
    $region24: #{tpu_custom_call.1} parent=1 // pred_region
      %s51 = ssub.s32 8192, 8192
      %52 = vsyncadd [#allocation8], %s51
      %s53 = sshll.u32 [#allocation7], 4
      %s54 = int_to_ptr.vmem [resolvable:$true] %s53
      %59 = dma.hbm_to_vmem [thread:$0]  %s5, 8192, %s54, [#allocation8], 256, 256, 16
    $region25: #{tpu_custom_call.1} parent=1 // pred_fallthru
      _
    // Predicated region
    $region26: #{tpu_custom_call.1} parent=1 // pred_check
      _
    $region27: #{tpu_custom_call.1} parent=1 // pred_check_branch
      %61 = sbr.rel (0) target = $region29
    $region28: #{tpu_custom_call.1} parent=1 // pred_region
      _
    $region29: #{tpu_custom_call.1} parent=1 // pred_fallthru
      _
    // Predicated region
    $region30: #{tpu_custom_call.1} parent=1 // pred_check
      _
    $region31: #{tpu_custom_call.1} parent=1 // pred_check_branch
      %63 = sbr.rel (0) target = $region33
    $region32: #{tpu_custom_call.1} parent=1 // pred_region
      %64 = dma.done [#allocation5], 16
    $region33: #{tpu_custom_call.1} parent=1 // pred_fallthru
      _
    // Predicated region
    $region34: #{tpu_custom_call.1} parent=1 // pred_check
      _
    $region35: #{tpu_custom_call.1} parent=1 // pred_check_branch
      %66 = sbr.rel (0) target = $region37
    $region36: #{tpu_custom_call.1} parent=1 // pred_region
      %67 = dma.done [#allocation3], 512
    $region37: #{tpu_custom_call.1} parent=1 // pred_fallthru
      _
    // Predicated region
    $region38: #{tpu_custom_call.1} parent=1 // pred_check
      _
    $region39: #{tpu_custom_call.1} parent=1 // pred_check_branch
      %69 = sbr.rel (0) target = $region41
    $region40: #{tpu_custom_call.1} parent=1 // pred_region
      %70 = dma.done [#allocation8], 8192
    $region41: #{tpu_custom_call.1} parent=1 // pred_fallthru
      _
    %71 = sfence
    %v72 = vld [vmem:[%s1] sm:$0xff]
    %v73 = vld [vmem:[%s1 + $0x8] sm:$0xff]
    %v74 = vld [vmem:[%s1 + $0x10] sm:$0xff]
    %v75 = vld [vmem:[%s1 + $0x18] sm:$0xff]
    %v76 = vld [vmem:[%s1 + $0x20] sm:$0xff]
    %v77 = vld [vmem:[%s1 + $0x28] sm:$0xff]
    %v78 = vld [vmem:[%s1 + $0x30] sm:$0xff]
    %v79 = vld [vmem:[%s1 + $0x38] sm:$0xff]
    %v80 = vld [vmem:[%s1 + $0x40] sm:$0xff]
    %v81 = vld [vmem:[%s1 + $0x48] sm:$0xff]
    %v82 = vld [vmem:[%s1 + $0x50] sm:$0xff]
    %v83 = vld [vmem:[%s1 + $0x58] sm:$0xff]
    %v84 = vld [vmem:[%s1 + $0x60] sm:$0xff]
    %v85 = vld [vmem:[%s1 + $0x68] sm:$0xff]
    %v86 = vld [vmem:[%s1 + $0x70] sm:$0xff]
    %v87 = vld [vmem:[%s1 + $0x78] sm:$0xff]
    %v88 = vld [vmem:[%s1 + $0x80] sm:$0xff]
    %v89 = vld [vmem:[%s1 + $0x88] sm:$0xff]
    %v90 = vld [vmem:[%s1 + $0x90] sm:$0xff]
    %v91 = vld [vmem:[%s1 + $0x98] sm:$0xff]
    %v92 = vld [vmem:[%s1 + $0xa0] sm:$0xff]
    %v93 = vld [vmem:[%s1 + $0xa8] sm:$0xff]
    %v94 = vld [vmem:[%s1 + $0xb0] sm:$0xff]
    %v95 = vld [vmem:[%s1 + $0xb8] sm:$0xff]
    %v96 = vld [vmem:[%s1 + $0xc0] sm:$0xff]
    %v97 = vld [vmem:[%s1 + $0xc8] sm:$0xff]
    %v98 = vld [vmem:[%s1 + $0xd0] sm:$0xff]
    %v99 = vld [vmem:[%s1 + $0xd8] sm:$0xff]
    %v100 = vld [vmem:[%s1 + $0xe0] sm:$0xff]
    %v101 = vld [vmem:[%s1 + $0xe8] sm:$0xff]
    %v102 = vld [vmem:[%s1 + $0xf0] sm:$0xff]
    %v103 = vld [vmem:[%s1 + $0xf8] sm:$0xff]
    %v104 = vld [vmem:[%s3] sm:$0xf]
    %vm105 = vcmask 31744
    %v107 = vsel %vm105, %v72, 0
    %v110 = vsel %vm105, %v73, 0
    %v113 = vsel %vm105, %v74, 0
    %v116 = vsel %vm105, %v75, 0
    %v119 = vsel %vm105, %v76, 0
    %v122 = vsel %vm105, %v77, 0
    %v125 = vsel %vm105, %v78, 0
    %v128 = vsel %vm105, %v79, 0
    %v131 = vsel %vm105, %v80, 0
    %v134 = vsel %vm105, %v81, 0
    %v137 = vsel %vm105, %v82, 0
    %v140 = vsel %vm105, %v83, 0
    %v143 = vsel %vm105, %v84, 0
    %v146 = vsel %vm105, %v85, 0
    %v149 = vsel %vm105, %v86, 0
    %v152 = vsel %vm105, %v87, 0
    %v155 = vsel %vm105, %v88, 0
    %v158 = vsel %vm105, %v89, 0
    %v161 = vsel %vm105, %v90, 0
    %v164 = vsel %vm105, %v91, 0
    %v167 = vsel %vm105, %v92, 0
    %v170 = vsel %vm105, %v93, 0
    %v173 = vsel %vm105, %v94, 0
    %v176 = vsel %vm105, %v95, 0
    %v179 = vsel %vm105, %v96, 0
    %v182 = vsel %vm105, %v97, 0
    %v185 = vsel %vm105, %v98, 0
    %v188 = vsel %vm105, %v99, 0
    %v191 = vsel %vm105, %v100, 0
    %v194 = vsel %vm105, %v101, 0
    %v197 = vsel %vm105, %v102, 0
    %v200 = vsel %vm105, %v103, 0
    %vm202 = vcmask 1043456
    %v204 = vsel %vm202, %v104, 0
    %206 = vmatprep.subr.mxu0 0.0
    %207 = vmatpush1.msra.mxu0 %v204
    %208 = vmatprep.subr.mxu0 0.0
    %209 = vmatpush1.msra.mxu0 0.0
    %210 = vmatprep.subr.mxu0 0.0
    %211 = vmatpush1.msra.mxu0 0.0
    %212 = vmatprep.subr.mxu0 0.0
    %213 = vmatpush1.msra.mxu0 0.0
    %214 = vmatprep.subr.mxu0 0.0
    %215 = vmatpush1.msra.mxu0 0.0
    %216 = vmatprep.subr.mxu0 0.0
    %217 = vmatpush1.msra.mxu0 0.0
    %218 = vmatprep.subr.mxu0 0.0
    %219 = vmatpush1.msra.mxu0 0.0
    %220 = vmatprep.subr.mxu0 0.0
    %221 = vmatpush1.msra.mxu0 0.0
    %222 = vmatprep.subr.mxu0 0.0
    %223 = vmatpush1.msra.mxu0 0.0
    %224 = vmatprep.subr.mxu0 0.0
    %225 = vmatpush1.msra.mxu0 0.0
    %226 = vmatprep.subr.mxu0 0.0
    %227 = vmatpush1.msra.mxu0 0.0
    %228 = vmatprep.subr.mxu0 0.0
    %229 = vmatpush1.msra.mxu0 0.0
    %230 = vmatprep.subr.mxu0 0.0
    %231 = vmatpush1.msra.mxu0 0.0
    %232 = vmatprep.subr.mxu0 0.0
    %233 = vmatpush1.msra.mxu0 0.0
    %234 = vmatprep.subr.mxu0 0.0
    %235 = vmatpush1.msra.mxu0 0.0
    %236 = vmatprep.subr.mxu0 0.0
    %237 = vmatpush1.msra.mxu0 0.0
    %238 = vmatprep.subr.mxu0 0.0
    %239 = vmatpush1.msra.mxu0 0.0
    %240 = vmatprep.subr.mxu0 0.0
    %241 = vmatpush1.msra.mxu0 0.0
    %242 = vmatprep.subr.mxu0 0.0
    %243 = vmatpush1.msra.mxu0 0.0
    %244 = vmatprep.subr.mxu0 0.0
    %245 = vmatpush1.msra.mxu0 0.0
    %246 = vmatprep.subr.mxu0 0.0
    %247 = vmatpush1.msra.mxu0 0.0
    %248 = vmatprep.subr.mxu0 0.0
    %249 = vmatpush1.msra.mxu0 0.0
    %250 = vmatprep.subr.mxu0 0.0
    %251 = vmatpush1.msra.mxu0 0.0
    %252 = vmatprep.subr.mxu0 0.0
    %253 = vmatpush1.msra.mxu0 0.0
    %254 = vmatprep.subr.mxu0 0.0
    %255 = vmatpush1.msra.mxu0 0.0
    %256 = vmatprep.subr.mxu0 0.0
    %257 = vmatpush1.msra.mxu0 0.0
    %258 = vmatprep.subr.mxu0 0.0
    %259 = vmatpush1.msra.mxu0 0.0
    %260 = vmatprep.subr.mxu0 0.0
    %261 = vmatpush1.msra.mxu0 0.0
    %262 = vmatprep.subr.mxu0 0.0
    %263 = vmatpush1.msra.mxu0 0.0
    %264 = vmatprep.subr.mxu0 0.0
    %265 = vmatpush1.msra.mxu0 0.0
    %266 = vmatprep.subr.mxu0 0.0
    %267 = vmatpush1.msra.mxu0 0.0
    %268 = vmatprep.subr.mxu0 0.0
    %269 = vmatpush1.msra.mxu0 0.0
    %270 = vmatprep.mubr.f32.mxu0 0.0
    %271 = vmatmul.mubr.f32.gmra.mrb[0].mxu0 %v107
    %v272 = vpop.f32.mrb[0].mxu0
    %v273 = vadd.f32 0.0, %v272
    %v274 = vpop.f32.mrb[0].mxu0
    %275 = vmatprep.mubr.f32.mxu0 0.0
    %276 = vmatmul.mubr.f32.gmra.mrb[0].mxu0 %v110
    %v277 = vpop.f32.mrb[0].mxu0
    %v278 = vadd.f32 0.0, %v277
    %v279 = vpop.f32.mrb[0].mxu0
    %280 = vmatprep.mubr.f32.mxu0 0.0
    %281 = vmatmul.mubr.f32.gmra.mrb[0].mxu0 %v113
    %v282 = vpop.f32.mrb[0].mxu0
    %v283 = vadd.f32 0.0, %v282
    %v284 = vpop.f32.mrb[0].mxu0
    %285 = vmatprep.mubr.f32.mxu0 0.0
    %286 = vmatmul.mubr.f32.gmra.mrb[0].mxu0 %v116
    %v287 = vpop.f32.mrb[0].mxu0
    %v288 = vadd.f32 0.0, %v287
    %v289 = vpop.f32.mrb[0].mxu0
    %290 = vmatprep.mubr.f32.mxu0 0.0
    %291 = vmatmul.mubr.f32.gmra.mrb[0].mxu0 %v119
    %v292 = vpop.f32.mrb[0].mxu0
    %v293 = vadd.f32 0.0, %v292
    %v294 = vpop.f32.mrb[0].mxu0
    %295 = vmatprep.mubr.f32.mxu0 0.0
    %296 = vmatmul.mubr.f32.gmra.mrb[0].mxu0 %v122
    %v297 = vpop.f32.mrb[0].mxu0
    %v298 = vadd.f32 0.0, %v297
    %v299 = vpop.f32.mrb[0].mxu0
    %300 = vmatprep.mubr.f32.mxu0 0.0
    %301 = vmatmul.mubr.f32.gmra.mrb[0].mxu0 %v125
    %v302 = vpop.f32.mrb[0].mxu0
    %v303 = vadd.f32 0.0, %v302
    %v304 = vpop.f32.mrb[0].mxu0
    %305 = vmatprep.mubr.f32.mxu0 0.0
    %306 = vmatmul.mubr.f32.gmra.mrb[0].mxu0 %v128
    %v307 = vpop.f32.mrb[0].mxu0
    %v308 = vadd.f32 0.0, %v307
    %v309 = vpop.f32.mrb[0].mxu0
    %310 = vmatprep.mubr.f32.mxu0 0.0
    %311 = vmatmul.mubr.f32.gmra.mrb[0].mxu0 %v131
    %v312 = vpop.f32.mrb[0].mxu0
    %v313 = vadd.f32 0.0, %v312
    %v314 = vpop.f32.mrb[0].mxu0
    %315 = vmatprep.mubr.f32.mxu0 0.0
    %316 = vmatmul.mubr.f32.gmra.mrb[0].mxu0 %v134
    %v317 = vpop.f32.mrb[0].mxu0
    %v318 = vadd.f32 0.0, %v317
    %v319 = vpop.f32.mrb[0].mxu0
    %320 = vmatprep.mubr.f32.mxu0 0.0
    %321 = vmatmul.mubr.f32.gmra.mrb[0].mxu0 %v137
    %v322 = vpop.f32.mrb[0].mxu0
    %v323 = vadd.f32 0.0, %v322
    %v324 = vpop.f32.mrb[0].mxu0
    %325 = vmatprep.mubr.f32.mxu0 0.0
    %326 = vmatmul.mubr.f32.gmra.mrb[0].mxu0 %v140
    %v327 = vpop.f32.mrb[0].mxu0
    %v328 = vadd.f32 0.0, %v327
    %v329 = vpop.f32.mrb[0].mxu0
    %330 = vmatprep.mubr.f32.mxu0 0.0
    %331 = vmatmul.mubr.f32.gmra.mrb[0].mxu0 %v143
    %v332 = vpop.f32.mrb[0].mxu0
    %v333 = vadd.f32 0.0, %v332
    %v334 = vpop.f32.mrb[0].mxu0
    %335 = vmatprep.mubr.f32.mxu0 0.0
    %336 = vmatmul.mubr.f32.gmra.mrb[0].mxu0 %v146
    %v337 = vpop.f32.mrb[0].mxu0
    %v338 = vadd.f32 0.0, %v337
    %v339 = vpop.f32.mrb[0].mxu0
    %340 = vmatprep.mubr.f32.mxu0 0.0
    %341 = vmatmul.mubr.f32.gmra.mrb[0].mxu0 %v149
    %v342 = vpop.f32.mrb[0].mxu0
    %v343 = vadd.f32 0.0, %v342
    %v344 = vpop.f32.mrb[0].mxu0
    %345 = vmatprep.mubr.f32.mxu0 0.0
    %346 = vmatmul.mubr.f32.gmra.mrb[0].mxu0 %v152
    %v347 = vpop.f32.mrb[0].mxu0
    %v348 = vadd.f32 0.0, %v347
    %v349 = vpop.f32.mrb[0].mxu0
    %350 = vmatprep.mubr.f32.mxu0 0.0
    %351 = vmatmul.mubr.f32.gmra.mrb[0].mxu0 %v155
    %v352 = vpop.f32.mrb[0].mxu0
    %v353 = vadd.f32 0.0, %v352
    %v354 = vpop.f32.mrb[0].mxu0
    %355 = vmatprep.mubr.f32.mxu0 0.0
    %356 = vmatmul.mubr.f32.gmra.mrb[0].mxu0 %v158
    %v357 = vpop.f32.mrb[0].mxu0
    %v358 = vadd.f32 0.0, %v357
    %v359 = vpop.f32.mrb[0].mxu0
    %360 = vmatprep.mubr.f32.mxu0 0.0
    %361 = vmatmul.mubr.f32.gmra.mrb[0].mxu0 %v161
    %v362 = vpop.f32.mrb[0].mxu0
    %v363 = vadd.f32 0.0, %v362
    %v364 = vpop.f32.mrb[0].mxu0
    %365 = vmatprep.mubr.f32.mxu0 0.0
    %366 = vmatmul.mubr.f32.gmra.mrb[0].mxu0 %v164
    %v367 = vpop.f32.mrb[0].mxu0
    %v368 = vadd.f32 0.0, %v367
    %v369 = vpop.f32.mrb[0].mxu0
    %370 = vmatprep.mubr.f32.mxu0 0.0
    %371 = vmatmul.mubr.f32.gmra.mrb[0].mxu0 %v167
    %v372 = vpop.f32.mrb[0].mxu0
    %v373 = vadd.f32 0.0, %v372
    %v374 = vpop.f32.mrb[0].mxu0
    %375 = vmatprep.mubr.f32.mxu0 0.0
    %376 = vmatmul.mubr.f32.gmra.mrb[0].mxu0 %v170
    %v377 = vpop.f32.mrb[0].mxu0
    %v378 = vadd.f32 0.0, %v377
    %v379 = vpop.f32.mrb[0].mxu0
    %380 = vmatprep.mubr.f32.mxu0 0.0
    %381 = vmatmul.mubr.f32.gmra.mrb[0].mxu0 %v173
    %v382 = vpop.f32.mrb[0].mxu0
    %v383 = vadd.f32 0.0, %v382
    %v384 = vpop.f32.mrb[0].mxu0
    %385 = vmatprep.mubr.f32.mxu0 0.0
    %386 = vmatmul.mubr.f32.gmra.mrb[0].mxu0 %v176
    %v387 = vpop.f32.mrb[0].mxu0
    %v388 = vadd.f32 0.0, %v387
    %v389 = vpop.f32.mrb[0].mxu0
    %390 = vmatprep.mubr.f32.mxu0 0.0
    %391 = vmatmul.mubr.f32.gmra.mrb[0].mxu0 %v179
    %v392 = vpop.f32.mrb[0].mxu0
    %v393 = vadd.f32 0.0, %v392
    %v394 = vpop.f32.mrb[0].mxu0
    %395 = vmatprep.mubr.f32.mxu0 0.0
    %396 = vmatmul.mubr.f32.gmra.mrb[0].mxu0 %v182
    %v397 = vpop.f32.mrb[0].mxu0
    %v398 = vadd.f32 0.0, %v397
    %v399 = vpop.f32.mrb[0].mxu0
    %400 = vmatprep.mubr.f32.mxu0 0.0
    %401 = vmatmul.mubr.f32.gmra.mrb[0].mxu0 %v185
    %v402 = vpop.f32.mrb[0].mxu0
    %v403 = vadd.f32 0.0, %v402
    %v404 = vpop.f32.mrb[0].mxu0
    %405 = vmatprep.mubr.f32.mxu0 0.0
    %406 = vmatmul.mubr.f32.gmra.mrb[0].mxu0 %v188
    %v407 = vpop.f32.mrb[0].mxu0
    %v408 = vadd.f32 0.0, %v407
    %v409 = vpop.f32.mrb[0].mxu0
    %410 = vmatprep.mubr.f32.mxu0 0.0
    %411 = vmatmul.mubr.f32.gmra.mrb[0].mxu0 %v191
    %v412 = vpop.f32.mrb[0].mxu0
    %v413 = vadd.f32 0.0, %v412
    %v414 = vpop.f32.mrb[0].mxu0
    %415 = vmatprep.mubr.f32.mxu0 0.0
    %416 = vmatmul.mubr.f32.gmra.mrb[0].mxu0 %v194
    %v417 = vpop.f32.mrb[0].mxu0
    %v418 = vadd.f32 0.0, %v417
    %v419 = vpop.f32.mrb[0].mxu0
    %420 = vmatprep.mubr.f32.mxu0 0.0
    %421 = vmatmul.mubr.f32.gmra.mrb[0].mxu0 %v197
    %v422 = vpop.f32.mrb[0].mxu0
    %v423 = vadd.f32 0.0, %v422
    %v424 = vpop.f32.mrb[0].mxu0
    %425 = vmatprep.mubr.f32.mxu0 0.0
    %426 = vmatmul.mubr.f32.gmra.mrb[0].mxu0 %v200
    %v427 = vpop.f32.mrb[0].mxu0
    %v428 = vadd.f32 0.0, %v427
    %v429 = vpop.f32.mrb[0].mxu0
    %430 = vdwg.mxu0
    %v431 = vmax.f32 %v273, 0.0
    %v432 = vmax.f32 %v278, 0.0
    %v433 = vmax.f32 %v283, 0.0
    %v434 = vmax.f32 %v288, 0.0
    %v435 = vmax.f32 %v293, 0.0
    %v436 = vmax.f32 %v298, 0.0
    %v437 = vmax.f32 %v303, 0.0
    %v438 = vmax.f32 %v308, 0.0
    %v439 = vmax.f32 %v313, 0.0
    %v440 = vmax.f32 %v318, 0.0
    %v441 = vmax.f32 %v323, 0.0
    %v442 = vmax.f32 %v328, 0.0
    %v443 = vmax.f32 %v333, 0.0
    %v444 = vmax.f32 %v338, 0.0
    %v445 = vmax.f32 %v343, 0.0
    %v446 = vmax.f32 %v348, 0.0
    %v447 = vmax.f32 %v353, 0.0
    %v448 = vmax.f32 %v358, 0.0
    %v449 = vmax.f32 %v363, 0.0
    %v450 = vmax.f32 %v368, 0.0
    %v451 = vmax.f32 %v373, 0.0
    %v452 = vmax.f32 %v378, 0.0
    %v453 = vmax.f32 %v383, 0.0
    %v454 = vmax.f32 %v388, 0.0
    %v455 = vmax.f32 %v393, 0.0
    %v456 = vmax.f32 %v398, 0.0
    %v457 = vmax.f32 %v403, 0.0
    %v458 = vmax.f32 %v408, 0.0
    %v459 = vmax.f32 %v413, 0.0
    %v460 = vmax.f32 %v418, 0.0
    %v461 = vmax.f32 %v423, 0.0
    %v462 = vmax.f32 %v428, 0.0
    %v463 = vlaneseq
    %v464 = vshrl.u32 %v463, 7
    %v465 = vadd.s32 %v464, 8
    %v466 = vadd.s32 %v464, 16
    %v467 = vadd.s32 %v464, 24
    %v468 = vadd.s32 %v464, 32
    %v469 = vadd.s32 %v464, 40
    %v470 = vadd.s32 %v464, 48
    %v471 = vadd.s32 %v464, 56
    %v472 = vadd.s32 %v464, 64
    %v473 = vadd.s32 %v464, 72
    %v474 = vadd.s32 %v464, 80
    %v475 = vadd.s32 %v464, 88
    %v476 = vadd.s32 %v464, 96
    %v477 = vadd.s32 %v464, 104
    %v478 = vadd.s32 %v464, 112
    %v479 = vadd.s32 %v464, 120
    %v480 = vadd.s32 %v464, 128
    %v481 = vadd.s32 %v464, 136
    %v482 = vadd.s32 %v464, 144
    %v483 = vadd.s32 %v464, 152
    %v484 = vadd.s32 %v464, 160
    %v485 = vadd.s32 %v464, 168
    %v486 = vadd.s32 %v464, 176
    %v487 = vadd.s32 %v464, 184
    %v488 = vadd.s32 %v464, 192
    %v489 = vadd.s32 %v464, 200
    %v490 = vadd.s32 %v464, 208
    %v491 = vadd.s32 %v464, 216
    %v492 = vadd.s32 %v464, 224
    %v493 = vadd.s32 %v464, 232
    %v494 = vadd.s32 %v464, 240
    %v495 = vadd.s32 %v464, 248
    %s496 = sld [smem:[#allocation2 + $0x1]]
    %s497 = sadd.s32 %s496, 128
    %v498 = vstv %s497
    %vm499 = vcmp.lt.s32.totalorder %v464, 128
    %vm500 = vcmp.lt.s32.totalorder %v465, 128
    %vm501 = vcmp.lt.s32.totalorder %v466, 128
    %vm502 = vcmp.lt.s32.totalorder %v467, 128
    %vm503 = vcmp.lt.s32.totalorder %v468, 128
    %vm504 = vcmp.lt.s32.totalorder %v469, 128
    %vm505 = vcmp.lt.s32.totalorder %v470, 128
    %vm506 = vcmp.lt.s32.totalorder %v471, 128
    %vm507 = vcmp.lt.s32.totalorder %v472, 128
    %vm508 = vcmp.lt.s32.totalorder %v473, 128
    %vm509 = vcmp.lt.s32.totalorder %v474, 128
    %vm510 = vcmp.lt.s32.totalorder %v475, 128
    %vm511 = vcmp.lt.s32.totalorder %v476, 128
    %vm512 = vcmp.lt.s32.totalorder %v477, 128
    %vm513 = vcmp.lt.s32.totalorder %v478, 128
    %vm514 = vcmp.lt.s32.totalorder %v479, 128
    %vm515 = vcmp.lt.s32.totalorder %v480, 128
    %vm516 = vcmp.lt.s32.totalorder %v481, 128
    %vm517 = vcmp.lt.s32.totalorder %v482, 128
    %vm518 = vcmp.lt.s32.totalorder %v483, 128
    %vm519 = vcmp.lt.s32.totalorder %v484, 128
    %vm520 = vcmp.lt.s32.totalorder %v485, 128
    %vm521 = vcmp.lt.s32.totalorder %v486, 128
    %vm522 = vcmp.lt.s32.totalorder %v487, 128
    %vm523 = vcmp.lt.s32.totalorder %v488, 128
    %vm524 = vcmp.lt.s32.totalorder %v489, 128
    %vm525 = vcmp.lt.s32.totalorder %v490, 128
    %vm526 = vcmp.lt.s32.totalorder %v491, 128
    %vm527 = vcmp.lt.s32.totalorder %v492, 128
    %vm528 = vcmp.lt.s32.totalorder %v493, 128
    %vm529 = vcmp.lt.s32.totalorder %v494, 128
    %vm530 = vcmp.lt.s32.totalorder %v495, 128
    %s531 = sld [smem:[#allocation2]]
    %v532 = vstv %s531
    %v533 = vsel %vm499, %v532, %v498
    %v534 = vsel %vm500, %v532, %v498
    %v535 = vsel %vm501, %v532, %v498
    %v536 = vsel %vm502, %v532, %v498
    %v537 = vsel %vm503, %v532, %v498
    %v538 = vsel %vm504, %v532, %v498
    %v539 = vsel %vm505, %v532, %v498
    %v540 = vsel %vm506, %v532, %v498
    %v541 = vsel %vm507, %v532, %v498
    %v542 = vsel %vm508, %v532, %v498
    %v543 = vsel %vm509, %v532, %v498
    %v544 = vsel %vm510, %v532, %v498
    %v545 = vsel %vm511, %v532, %v498
    %v546 = vsel %vm512, %v532, %v498
    %v547 = vsel %vm513, %v532, %v498
    %v548 = vsel %vm514, %v532, %v498
    %v549 = vsel %vm515, %v532, %v498
    %v550 = vsel %vm516, %v532, %v498
    %v551 = vsel %vm517, %v532, %v498
    %v552 = vsel %vm518, %v532, %v498
    %v553 = vsel %vm519, %v532, %v498
    %v554 = vsel %vm520, %v532, %v498
    %v555 = vsel %vm521, %v532, %v498
    %v556 = vsel %vm522, %v532, %v498
    %v557 = vsel %vm523, %v532, %v498
    %v558 = vsel %vm524, %v532, %v498
    %v559 = vsel %vm525, %v532, %v498
    %v560 = vsel %vm526, %v532, %v498
    %v561 = vsel %vm527, %v532, %v498
    %v562 = vsel %vm528, %v532, %v498
    %v563 = vsel %vm529, %v532, %v498
    %v564 = vsel %vm530, %v532, %v498
    %vm565 = vcmp.lt.s32.totalorder %v464, %v533
    %vm566 = vcmp.lt.s32.totalorder %v465, %v534
    %vm567 = vcmp.lt.s32.totalorder %v466, %v535
    %vm568 = vcmp.lt.s32.totalorder %v467, %v536
    %vm569 = vcmp.lt.s32.totalorder %v468, %v537
    %vm570 = vcmp.lt.s32.totalorder %v469, %v538
    %vm571 = vcmp.lt.s32.totalorder %v470, %v539
    %vm572 = vcmp.lt.s32.totalorder %v471, %v540
    %vm573 = vcmp.lt.s32.totalorder %v472, %v541
    %vm574 = vcmp.lt.s32.totalorder %v473, %v542
    %vm575 = vcmp.lt.s32.totalorder %v474, %v543
    %vm576 = vcmp.lt.s32.totalorder %v475, %v544
    %vm577 = vcmp.lt.s32.totalorder %v476, %v545
    %vm578 = vcmp.lt.s32.totalorder %v477, %v546
    %vm579 = vcmp.lt.s32.totalorder %v478, %v547
    %vm580 = vcmp.lt.s32.totalorder %v479, %v548
    %vm581 = vcmp.lt.s32.totalorder %v480, %v549
    %vm582 = vcmp.lt.s32.totalorder %v481, %v550
    %vm583 = vcmp.lt.s32.totalorder %v482, %v551
    %vm584 = vcmp.lt.s32.totalorder %v483, %v552
    %vm585 = vcmp.lt.s32.totalorder %v484, %v553
    %vm586 = vcmp.lt.s32.totalorder %v485, %v554
    %vm587 = vcmp.lt.s32.totalorder %v486, %v555
    %vm588 = vcmp.lt.s32.totalorder %v487, %v556
    %vm589 = vcmp.lt.s32.totalorder %v488, %v557
    %vm590 = vcmp.lt.s32.totalorder %v489, %v558
    %vm591 = vcmp.lt.s32.totalorder %v490, %v559
    %vm592 = vcmp.lt.s32.totalorder %v491, %v560
    %vm593 = vcmp.lt.s32.totalorder %v492, %v561
    %vm594 = vcmp.lt.s32.totalorder %v493, %v562
    %vm595 = vcmp.lt.s32.totalorder %v494, %v563
    %vm596 = vcmp.lt.s32.totalorder %v495, %v564
    %v597 = vsel %vm565, %v431, 0.0
    %v598 = vsel %vm566, %v432, 0.0
    %v599 = vsel %vm567, %v433, 0.0
    %v600 = vsel %vm568, %v434, 0.0
    %v601 = vsel %vm569, %v435, 0.0
    %v602 = vsel %vm570, %v436, 0.0
    %v603 = vsel %vm571, %v437, 0.0
    %v604 = vsel %vm572, %v438, 0.0
    %v605 = vsel %vm573, %v439, 0.0
    %v606 = vsel %vm574, %v440, 0.0
    %v607 = vsel %vm575, %v441, 0.0
    %v608 = vsel %vm576, %v442, 0.0
    %v609 = vsel %vm577, %v443, 0.0
    %v610 = vsel %vm578, %v444, 0.0
    %v611 = vsel %vm579, %v445, 0.0
    %v612 = vsel %vm580, %v446, 0.0
    %v613 = vsel %vm581, %v447, 0.0
    %v614 = vsel %vm582, %v448, 0.0
    %v615 = vsel %vm583, %v449, 0.0
    %v616 = vsel %vm584, %v450, 0.0
    %v617 = vsel %vm585, %v451, 0.0
    %v618 = vsel %vm586, %v452, 0.0
    %v619 = vsel %vm587, %v453, 0.0
    %v620 = vsel %vm588, %v454, 0.0
    %v621 = vsel %vm589, %v455, 0.0
    %v622 = vsel %vm590, %v456, 0.0
    %v623 = vsel %vm591, %v457, 0.0
    %v624 = vsel %vm592, %v458, 0.0
    %v625 = vsel %vm593, %v459, 0.0
    %v626 = vsel %vm594, %v460, 0.0
    %v627 = vsel %vm595, %v461, 0.0
    %v628 = vsel %vm596, %v462, 0.0
    %629 = vst [vmem:[#allocation9] sm:$0xff] %v597
    %630 = vst [vmem:[#allocation9 + $0x8] sm:$0xff] %v598
    %631 = vst [vmem:[#allocation9 + $0x10] sm:$0xff] %v599
    %632 = vst [vmem:[#allocation9 + $0x18] sm:$0xff] %v600
    %633 = vst [vmem:[#allocation9 + $0x20] sm:$0xff] %v601
    %634 = vst [vmem:[#allocation9 + $0x28] sm:$0xff] %v602
    %635 = vst [vmem:[#allocation9 + $0x30] sm:$0xff] %v603
    %636 = vst [vmem:[#allocation9 + $0x38] sm:$0xff] %v604
    %637 = vst [vmem:[#allocation9 + $0x40] sm:$0xff] %v605
    %638 = vst [vmem:[#allocation9 + $0x48] sm:$0xff] %v606
    %639 = vst [vmem:[#allocation9 + $0x50] sm:$0xff] %v607
    %640 = vst [vmem:[#allocation9 + $0x58] sm:$0xff] %v608
    %641 = vst [vmem:[#allocation9 + $0x60] sm:$0xff] %v609
    %642 = vst [vmem:[#allocation9 + $0x68] sm:$0xff] %v610
    %643 = vst [vmem:[#allocation9 + $0x70] sm:$0xff] %v611
    %644 = vst [vmem:[#allocation9 + $0x78] sm:$0xff] %v612
    %645 = vst [vmem:[#allocation9 + $0x80] sm:$0xff] %v613
    %646 = vst [vmem:[#allocation9 + $0x88] sm:$0xff] %v614
    %647 = vst [vmem:[#allocation9 + $0x90] sm:$0xff] %v615
    %648 = vst [vmem:[#allocation9 + $0x98] sm:$0xff] %v616
    %649 = vst [vmem:[#allocation9 + $0xa0] sm:$0xff] %v617
    %650 = vst [vmem:[#allocation9 + $0xa8] sm:$0xff] %v618
    %651 = vst [vmem:[#allocation9 + $0xb0] sm:$0xff] %v619
    %652 = vst [vmem:[#allocation9 + $0xb8] sm:$0xff] %v620
    %653 = vst [vmem:[#allocation9 + $0xc0] sm:$0xff] %v621
    %654 = vst [vmem:[#allocation9 + $0xc8] sm:$0xff] %v622
    %655 = vst [vmem:[#allocation9 + $0xd0] sm:$0xff] %v623
    %656 = vst [vmem:[#allocation9 + $0xd8] sm:$0xff] %v624
    %657 = vst [vmem:[#allocation9 + $0xe0] sm:$0xff] %v625
    %658 = vst [vmem:[#allocation9 + $0xe8] sm:$0xff] %v626
    %659 = vst [vmem:[#allocation9 + $0xf0] sm:$0xff] %v627
    %660 = vst [vmem:[#allocation9 + $0xf8] sm:$0xff] %v628
    %v661 = vld [vmem:[#allocation9] sm:$0xff]
    %v662 = vld [vmem:[#allocation9 + $0x8] sm:$0xff]
    %v663 = vld [vmem:[#allocation9 + $0x10] sm:$0xff]
    %v664 = vld [vmem:[#allocation9 + $0x18] sm:$0xff]
    %v665 = vld [vmem:[#allocation9 + $0x20] sm:$0xff]
    %v666 = vld [vmem:[#allocation9 + $0x28] sm:$0xff]
    %v667 = vld [vmem:[#allocation9 + $0x30] sm:$0xff]
    %v668 = vld [vmem:[#allocation9 + $0x38] sm:$0xff]
    %v669 = vld [vmem:[#allocation9 + $0x40] sm:$0xff]
    %v670 = vld [vmem:[#allocation9 + $0x48] sm:$0xff]
    %v671 = vld [vmem:[#allocation9 + $0x50] sm:$0xff]
    %v672 = vld [vmem:[#allocation9 + $0x58] sm:$0xff]
    %v673 = vld [vmem:[#allocation9 + $0x60] sm:$0xff]
    %v674 = vld [vmem:[#allocation9 + $0x68] sm:$0xff]
    %v675 = vld [vmem:[#allocation9 + $0x70] sm:$0xff]
    %v676 = vld [vmem:[#allocation9 + $0x78] sm:$0xff]
    %v677 = vld [vmem:[#allocation9 + $0x80] sm:$0xff]
    %v678 = vld [vmem:[#allocation9 + $0x88] sm:$0xff]
    %v679 = vld [vmem:[#allocation9 + $0x90] sm:$0xff]
    %v680 = vld [vmem:[#allocation9 + $0x98] sm:$0xff]
    %v681 = vld [vmem:[#allocation9 + $0xa0] sm:$0xff]
    %v682 = vld [vmem:[#allocation9 + $0xa8] sm:$0xff]
    %v683 = vld [vmem:[#allocation9 + $0xb0] sm:$0xff]
    %v684 = vld [vmem:[#allocation9 + $0xb8] sm:$0xff]
    %v685 = vld [vmem:[#allocation9 + $0xc0] sm:$0xff]
    %v686 = vld [vmem:[#allocation9 + $0xc8] sm:$0xff]
    %v687 = vld [vmem:[#allocation9 + $0xd0] sm:$0xff]
    %v688 = vld [vmem:[#allocation9 + $0xd8] sm:$0xff]
    %v689 = vld [vmem:[#allocation9 + $0xe0] sm:$0xff]
    %v690 = vld [vmem:[#allocation9 + $0xe8] sm:$0xff]
    %v691 = vld [vmem:[#allocation9 + $0xf0] sm:$0xff]
    %v692 = vld [vmem:[#allocation9 + $0xf8] sm:$0xff]
    %v693 = vmax.f32 %v661, 1e-06
    %v694 = vmax.f32 %v662, 1e-06
    %v695 = vmax.f32 %v663, 1e-06
    %v696 = vmax.f32 %v664, 1e-06
    %v697 = vmax.f32 %v665, 1e-06
    %v698 = vmax.f32 %v666, 1e-06
    %v699 = vmax.f32 %v667, 1e-06
    %v700 = vmax.f32 %v668, 1e-06
    %v701 = vmax.f32 %v669, 1e-06
    %v702 = vmax.f32 %v670, 1e-06
    %v703 = vmax.f32 %v671, 1e-06
    %v704 = vmax.f32 %v672, 1e-06
    %v705 = vmax.f32 %v673, 1e-06
    %v706 = vmax.f32 %v674, 1e-06
    %v707 = vmax.f32 %v675, 1e-06
    %v708 = vmax.f32 %v676, 1e-06
    %v709 = vmax.f32 %v677, 1e-06
    %v710 = vmax.f32 %v678, 1e-06
    %v711 = vmax.f32 %v679, 1e-06
    %v712 = vmax.f32 %v680, 1e-06
    %v713 = vmax.f32 %v681, 1e-06
    %v714 = vmax.f32 %v682, 1e-06
    %v715 = vmax.f32 %v683, 1e-06
    %v716 = vmax.f32 %v684, 1e-06
    %v717 = vmax.f32 %v685, 1e-06
    %v718 = vmax.f32 %v686, 1e-06
    %v719 = vmax.f32 %v687, 1e-06
    %v720 = vmax.f32 %v688, 1e-06
    %v721 = vmax.f32 %v689, 1e-06
    %v722 = vmax.f32 %v690, 1e-06
    %v723 = vmax.f32 %v691, 1e-06
    %v724 = vmax.f32 %v692, 1e-06
    %v725 = vmul.f32 %v693, %v693
    %v726 = vmul.f32 %v694, %v694
    %v727 = vmul.f32 %v695, %v695
    %v728 = vmul.f32 %v696, %v696
    %v729 = vmul.f32 %v697, %v697
    %v730 = vmul.f32 %v698, %v698
    %v731 = vmul.f32 %v699, %v699
    %v732 = vmul.f32 %v700, %v700
    %v733 = vmul.f32 %v701, %v701
    %v734 = vmul.f32 %v702, %v702
    %v735 = vmul.f32 %v703, %v703
    %v736 = vmul.f32 %v704, %v704
    %v737 = vmul.f32 %v705, %v705
    %v738 = vmul.f32 %v706, %v706
    %v739 = vmul.f32 %v707, %v707
    %v740 = vmul.f32 %v708, %v708
    %v741 = vmul.f32 %v709, %v709
    %v742 = vmul.f32 %v710, %v710
    %v743 = vmul.f32 %v711, %v711
    %v744 = vmul.f32 %v712, %v712
    %v745 = vmul.f32 %v713, %v713
    %v746 = vmul.f32 %v714, %v714
    %v747 = vmul.f32 %v715, %v715
    %v748 = vmul.f32 %v716, %v716
    %v749 = vmul.f32 %v717, %v717
    %v750 = vmul.f32 %v718, %v718
    %v751 = vmul.f32 %v719, %v719
    %v752 = vmul.f32 %v720, %v720
    %v753 = vmul.f32 %v721, %v721
    %v754 = vmul.f32 %v722, %v722
    %v755 = vmul.f32 %v723, %v723
    %v756 = vmul.f32 %v724, %v724
    %v757 = vmul.f32 %v725, %v693
    %v758 = vmul.f32 %v726, %v694
    %v759 = vmul.f32 %v727, %v695
    %v760 = vmul.f32 %v728, %v696
    %v761 = vmul.f32 %v729, %v697
    %v762 = vmul.f32 %v730, %v698
    %v763 = vmul.f32 %v731, %v699
    %v764 = vmul.f32 %v732, %v700
    %v765 = vmul.f32 %v733, %v701
    %v766 = vmul.f32 %v734, %v702
    %v767 = vmul.f32 %v735, %v703
    %v768 = vmul.f32 %v736, %v704
    %v769 = vmul.f32 %v737, %v705
    %v770 = vmul.f32 %v738, %v706
    %v771 = vmul.f32 %v739, %v707
    %v772 = vmul.f32 %v740, %v708
    %v773 = vmul.f32 %v741, %v709
    %v774 = vmul.f32 %v742, %v710
    %v775 = vmul.f32 %v743, %v711
    %v776 = vmul.f32 %v744, %v712
    %v777 = vmul.f32 %v745, %v713
    %v778 = vmul.f32 %v746, %v714
    %v779 = vmul.f32 %v747, %v715
    %v780 = vmul.f32 %v748, %v716
    %v781 = vmul.f32 %v749, %v717
    %v782 = vmul.f32 %v750, %v718
    %v783 = vmul.f32 %v751, %v719
    %v784 = vmul.f32 %v752, %v720
    %v785 = vmul.f32 %v753, %v721
    %v786 = vmul.f32 %v754, %v722
    %v787 = vmul.f32 %v755, %v723
    %v788 = vmul.f32 %v756, %v724
    %v789 = vsel %vm565, %v757, 0.0
    %v790 = vsel %vm566, %v758, 0.0
    %v791 = vsel %vm567, %v759, 0.0
    %v792 = vsel %vm568, %v760, 0.0
    %v793 = vsel %vm569, %v761, 0.0
    %v794 = vsel %vm570, %v762, 0.0
    %v795 = vsel %vm571, %v763, 0.0
    %v796 = vsel %vm572, %v764, 0.0
    %v797 = vsel %vm573, %v765, 0.0
    %v798 = vsel %vm574, %v766, 0.0
    %v799 = vsel %vm575, %v767, 0.0
    %v800 = vsel %vm576, %v768, 0.0
    %v801 = vsel %vm577, %v769, 0.0
    %v802 = vsel %vm578, %v770, 0.0
    %v803 = vsel %vm579, %v771, 0.0
    %v804 = vsel %vm580, %v772, 0.0
    %v805 = vsel %vm581, %v773, 0.0
    %v806 = vsel %vm582, %v774, 0.0
    %v807 = vsel %vm583, %v775, 0.0
    %v808 = vsel %vm584, %v776, 0.0
    %v809 = vsel %vm585, %v777, 0.0
    %v810 = vsel %vm586, %v778, 0.0
    %v811 = vsel %vm587, %v779, 0.0
    %v812 = vsel %vm588, %v780, 0.0
    %v813 = vsel %vm589, %v781, 0.0
    %v814 = vsel %vm590, %v782, 0.0
    %v815 = vsel %vm591, %v783, 0.0
    %v816 = vsel %vm592, %v784, 0.0
    %v817 = vsel %vm593, %v785, 0.0
    %v818 = vsel %vm594, %v786, 0.0
    %v819 = vsel %vm595, %v787, 0.0
    %v820 = vsel %vm596, %v788, 0.0
    %v821 = vlaneseq
    %v822 = vand.u32 %v821, 127
    %v823 = vadd.s32 %v822, 128
    %v824 = vmul.u32 %v464, 128
    %vm825 = vcmp.ge.s32.totalorder %v822, %v824
    %vm826 = vcmp.ge.s32.totalorder %v823, %v824
    %v827 = vadd.s32 %v464, 1
    %v828 = vmul.u32 %v827, 128
    %vm829 = vcmp.lt.s32.totalorder %v822, %v828
    %vm830 = vcmp.lt.s32.totalorder %v823, %v828
    %vm831 = vmand %vm825, %vm829
    %vm832 = vmand %vm826, %vm830
    %v833 = vsel %vm831, 1, 0
    %v834 = vsel %vm832, 1, 0
    %v835 = vcvt.s32.f32 %v833
    %v836 = vcvt.s32.f32 %v834
    %837 = vmatprep.subr.mxu0 0.0
    %838 = vmatpush1.msra.mxu0 %v789
    %839 = vmatprep.subr.mxu0 0.0
    %840 = vmatpush1.msra.mxu0 %v790
    %841 = vmatprep.subr.mxu0 0.0
    %842 = vmatpush1.msra.mxu0 %v791
    %843 = vmatprep.subr.mxu0 0.0
    %844 = vmatpush1.msra.mxu0 %v792
    %845 = vmatprep.subr.mxu0 0.0
    %846 = vmatpush1.msra.mxu0 %v793
    %847 = vmatprep.subr.mxu0 0.0
    %848 = vmatpush1.msra.mxu0 %v794
    %849 = vmatprep.subr.mxu0 0.0
    %850 = vmatpush1.msra.mxu0 %v795
    %851 = vmatprep.subr.mxu0 0.0
    %852 = vmatpush1.msra.mxu0 %v796
    %853 = vmatprep.subr.mxu0 0.0
    %854 = vmatpush1.msra.mxu0 %v797
    %855 = vmatprep.subr.mxu0 0.0
    %856 = vmatpush1.msra.mxu0 %v798
    %857 = vmatprep.subr.mxu0 0.0
    %858 = vmatpush1.msra.mxu0 %v799
    %859 = vmatprep.subr.mxu0 0.0
    %860 = vmatpush1.msra.mxu0 %v800
    %861 = vmatprep.subr.mxu0 0.0
    %862 = vmatpush1.msra.mxu0 %v801
    %863 = vmatprep.subr.mxu0 0.0
    %864 = vmatpush1.msra.mxu0 %v802
    %865 = vmatprep.subr.mxu0 0.0
    %866 = vmatpush1.msra.mxu0 %v803
    %867 = vmatprep.subr.mxu0 0.0
    %868 = vmatpush1.msra.mxu0 %v804
    %869 = vmatprep.subr.mxu0 0.0
    %870 = vmatpush1.msra.mxu0 %v805
    %871 = vmatprep.subr.mxu0 0.0
    %872 = vmatpush1.msra.mxu0 %v806
    %873 = vmatprep.subr.mxu0 0.0
    %874 = vmatpush1.msra.mxu0 %v807
    %875 = vmatprep.subr.mxu0 0.0
    %876 = vmatpush1.msra.mxu0 %v808
    %877 = vmatprep.subr.mxu0 0.0
    %878 = vmatpush1.msra.mxu0 %v809
    %879 = vmatprep.subr.mxu0 0.0
    %880 = vmatpush1.msra.mxu0 %v810
    %881 = vmatprep.subr.mxu0 0.0
    %882 = vmatpush1.msra.mxu0 %v811
    %883 = vmatprep.subr.mxu0 0.0
    %884 = vmatpush1.msra.mxu0 %v812
    %885 = vmatprep.subr.mxu0 0.0
    %886 = vmatpush1.msra.mxu0 %v813
    %887 = vmatprep.subr.mxu0 0.0
    %888 = vmatpush1.msra.mxu0 %v814
    %889 = vmatprep.subr.mxu0 0.0
    %890 = vmatpush1.msra.mxu0 %v815
    %891 = vmatprep.subr.mxu0 0.0
    %892 = vmatpush1.msra.mxu0 %v816
    %893 = vmatprep.subr.mxu0 0.0
    %894 = vmatpush1.msra.mxu0 %v817
    %895 = vmatprep.subr.mxu0 0.0
    %896 = vmatpush1.msra.mxu0 %v818
    %897 = vmatprep.subr.mxu0 0.0
    %898 = vmatpush1.msra.mxu0 %v819
    %899 = vmatprep.subr.mxu0 0.0
    %900 = vmatpush1.msra.mxu0 %v820
    %901 = vmatprep.mubr.f32.mxu0 %v836
    %902 = vmatmul.mubr.f32.gmra.mrb[0].mxu0 %v835
    %v903 = vpop.f32.mrb[0].mxu0
    %v904 = vadd.f32 0.0, %v903
    %v905 = vpop.f32.mrb[0].mxu0
    %906 = vdwg.mxu0
    %s907 = sld [smem:[#allocation2 + $0x1]]
    %v908 = vstv %s907
    %vm909 = vcmp.eq.s32.totalorder %v464, 0
    %s910 = sld [smem:[#allocation2]]
    %v911 = vstv %s910
    %v912 = vsel %vm909, %v911, %v908
    %v913 = vcvt.s32.f32 %v912
    %v914 = vmax.f32 %v913, 1.0
    %v915 = vrcp.pop %v914
    %v916 = vmul.f32 %v904, %v915
    %v917 = vmax.f32 %v916, 1e-18
    %v918 = vlog2.pop %v917
    %v919 = vmul.f32 %v918, 0.6931472
    %v920 = vmul.f32 %v919, 0.33333334
    %v921 = vmul.f32 %v920, 1.442695
    %v922 = vpow.pop %v921
    %v923 = vld [vmem:[%s6] sm:$0x1]
    %v924 = vld [vmem:[#allocation6] sm:$0xff]
    %v925 = vld [vmem:[#allocation6 + $0x8] sm:$0xff]
    %v926 = vld [vmem:[#allocation6 + $0x10] sm:$0x3]
    %v927 = vld [vmem:[#allocation6 + $0x18] sm:$0x3]
    %v928 = vld [vmem:[%s4] sm:$0xff]
    %v929 = vld [vmem:[%s4 + $0x8] sm:$0xff]
    %v930 = vld [vmem:[%s4 + $0x10] sm:$0xff]
    %v931 = vld [vmem:[%s4 + $0x18] sm:$0xff]
    %v932 = vld [vmem:[%s4 + $0x20] sm:$0xff]
    %v933 = vld [vmem:[%s4 + $0x28] sm:$0xff]
    %v934 = vld [vmem:[%s4 + $0x30] sm:$0xff]
    %v935 = vld [vmem:[%s4 + $0x38] sm:$0xff]
    %v936 = vld [vmem:[%s4 + $0x40] sm:$0xff]
    %v937 = vld [vmem:[%s4 + $0x48] sm:$0xff]
    %v938 = vld [vmem:[%s4 + $0x50] sm:$0xff]
    %v939 = vld [vmem:[%s4 + $0x58] sm:$0xff]
    %v940 = vld [vmem:[%s4 + $0x60] sm:$0xff]
    %v941 = vld [vmem:[%s4 + $0x68] sm:$0xff]
    %v942 = vld [vmem:[%s4 + $0x70] sm:$0xff]
    %v943 = vld [vmem:[%s4 + $0x78] sm:$0xff]
    %v944 = vld [vmem:[%s4 + $0x80] sm:$0xff]
    %v945 = vld [vmem:[%s4 + $0x88] sm:$0xff]
    %v946 = vld [vmem:[%s4 + $0x90] sm:$0xff]
    %v947 = vld [vmem:[%s4 + $0x98] sm:$0xff]
    %v948 = vld [vmem:[%s4 + $0xa0] sm:$0xff]
    %v949 = vld [vmem:[%s4 + $0xa8] sm:$0xff]
    %v950 = vld [vmem:[%s4 + $0xb0] sm:$0xff]
    %v951 = vld [vmem:[%s4 + $0xb8] sm:$0xff]
    %v952 = vld [vmem:[%s4 + $0xc0] sm:$0xff]
    %v953 = vld [vmem:[%s4 + $0xc8] sm:$0xff]
    %v954 = vld [vmem:[%s4 + $0xd0] sm:$0xff]
    %v955 = vld [vmem:[%s4 + $0xd8] sm:$0xff]
    %v956 = vld [vmem:[%s4 + $0xe0] sm:$0xff]
    %v957 = vld [vmem:[%s4 + $0xe8] sm:$0xff]
    %v958 = vld [vmem:[%s4 + $0xf0] sm:$0xff]
    %v959 = vld [vmem:[%s4 + $0xf8] sm:$0xff]
    %v960 = vlaneseq
    %v961 = vshrl.u32 %v960, 7
    %v962 = vsub.s32 0, %v961
    %v963 = vrot.slane %v923, %v962
    %964 = vmatprep.subr.mxu0 0.0
    %965 = vmatpush1.msra.mxu0 %v928
    %966 = vmatprep.subr.mxu0 0.0
    %967 = vmatpush1.msra.mxu0 %v929
    %968 = vmatprep.subr.mxu0 0.0
    %969 = vmatpush1.msra.mxu0 %v930
    %970 = vmatprep.subr.mxu0 0.0
    %971 = vmatpush1.msra.mxu0 %v931
    %972 = vmatprep.subr.mxu0 0.0
    %973 = vmatpush1.msra.mxu0 %v932
    %974 = vmatprep.subr.mxu0 0.0
    %975 = vmatpush1.msra.mxu0 %v933
    %976 = vmatprep.subr.mxu0 0.0
    %977 = vmatpush1.msra.mxu0 %v934
    %978 = vmatprep.subr.mxu0 0.0
    %979 = vmatpush1.msra.mxu0 %v935
    %980 = vmatprep.subr.mxu0 0.0
    %981 = vmatpush1.msra.mxu0 %v936
    %982 = vmatprep.subr.mxu0 0.0
    %983 = vmatpush1.msra.mxu0 %v937
    %984 = vmatprep.subr.mxu0 0.0
    %985 = vmatpush1.msra.mxu0 %v938
    %986 = vmatprep.subr.mxu0 0.0
    %987 = vmatpush1.msra.mxu0 %v939
    %988 = vmatprep.subr.mxu0 0.0
    %989 = vmatpush1.msra.mxu0 %v940
    %990 = vmatprep.subr.mxu0 0.0
    %991 = vmatpush1.msra.mxu0 %v941
    %992 = vmatprep.subr.mxu0 0.0
    %993 = vmatpush1.msra.mxu0 %v942
    %994 = vmatprep.subr.mxu0 0.0
    %995 = vmatpush1.msra.mxu0 %v943
    %996 = vmatprep.subr.mxu0 0.0
    %997 = vmatpush1.msra.mxu0 %v944
    %998 = vmatprep.subr.mxu0 0.0
    %999 = vmatpush1.msra.mxu0 %v945
    %1000 = vmatprep.subr.mxu0 0.0
    %1001 = vmatpush1.msra.mxu0 %v946
    %1002 = vmatprep.subr.mxu0 0.0
    %1003 = vmatpush1.msra.mxu0 %v947
    %1004 = vmatprep.subr.mxu0 0.0
    %1005 = vmatpush1.msra.mxu0 %v948
    %1006 = vmatprep.subr.mxu0 0.0
    %1007 = vmatpush1.msra.mxu0 %v949
    %1008 = vmatprep.subr.mxu0 0.0
    %1009 = vmatpush1.msra.mxu0 %v950
    %1010 = vmatprep.subr.mxu0 0.0
    %1011 = vmatpush1.msra.mxu0 %v951
    %1012 = vmatprep.subr.mxu0 0.0
    %1013 = vmatpush1.msra.mxu0 %v952
    %1014 = vmatprep.subr.mxu0 0.0
    %1015 = vmatpush1.msra.mxu0 %v953
    %1016 = vmatprep.subr.mxu0 0.0
    %1017 = vmatpush1.msra.mxu0 %v954
    %1018 = vmatprep.subr.mxu0 0.0
    %1019 = vmatpush1.msra.mxu0 %v955
    %1020 = vmatprep.subr.mxu0 0.0
    %1021 = vmatpush1.msra.mxu0 %v956
    %1022 = vmatprep.subr.mxu0 0.0
    %1023 = vmatpush1.msra.mxu0 %v957
    %1024 = vmatprep.subr.mxu0 0.0
    %1025 = vmatpush1.msra.mxu0 %v958
    %1026 = vmatprep.subr.mxu0 0.0
    %1027 = vmatpush1.msra.mxu0 %v959
    %1028 = vmatprep.mubr.f32.mxu0 %v925
    %1029 = vmatmul.mubr.f32.gmra.mrb[0].mxu0 %v924
    %v1030 = vpop.f32.mrb[0].mxu0
    %v1031 = vadd.f32 %v963, %v1030
    %v1032 = vpop.f32.mrb[0].mxu0
    %1033 = vmatprep.mubr.f32.mxu0 %v927
    %1034 = vmatmul.mubr.f32.gmra.mrb[0].mxu0 %v926
    %v1035 = vpop.f32.mrb[0].mxu0
    %v1036 = vadd.f32 %v963, %v1035
    %v1037 = vpop.f32.mrb[0].mxu0
    %1038 = vdwg.mxu0
    %v1039 = vmax.f32 %v1031, 0.0
    %v1040 = vmax.f32 %v1036, 0.0
    %1041 = vst [vmem:[#allocation10] sm:$0xff] %v1039
    %1042 = vst [vmem:[#allocation10 + $0x8] sm:$0x3] %v1040
    %v1043 = vmul.u32 %v464, 5
    %vm1044 = vcmp.ge.s32.totalorder %v822, %v1043
    %v1045 = vmul.u32 %v827, 5
    %vm1046 = vcmp.lt.s32.totalorder %v822, %v1045
    %vm1047 = vmand %vm1044, %vm1046
    %v1048 = vsel %vm1047, 1, 0
    %v1049 = vcvt.s32.f32 %v1048
    %vm1050 = vcmask 80896
    %v1052 = vsel %vm1050, %v1049, 0
    %vm1054 = vcmask 1041408
    %v1056 = vsel %vm1054, %v1040, 0
    %1058 = vmatprep.subr.mxu0 0.0
    %1059 = vmatpush1.msra.mxu0 %v1039
    %1060 = vmatprep.subr.mxu0 0.0
    %1061 = vmatpush1.msra.mxu0 %v1056
    %1062 = vmatprep.subr.mxu0 0.0
    %1063 = vmatpush1.msra.mxu0 0.0
    %1064 = vmatprep.subr.mxu0 0.0
    %1065 = vmatpush1.msra.mxu0 0.0
    %1066 = vmatprep.subr.mxu0 0.0
    %1067 = vmatpush1.msra.mxu0 0.0
    %1068 = vmatprep.subr.mxu0 0.0
    %1069 = vmatpush1.msra.mxu0 0.0
    %1070 = vmatprep.subr.mxu0 0.0
    %1071 = vmatpush1.msra.mxu0 0.0
    %1072 = vmatprep.subr.mxu0 0.0
    %1073 = vmatpush1.msra.mxu0 0.0
    %1074 = vmatprep.subr.mxu0 0.0
    %1075 = vmatpush1.msra.mxu0 0.0
    %1076 = vmatprep.subr.mxu0 0.0
    %1077 = vmatpush1.msra.mxu0 0.0
    %1078 = vmatprep.subr.mxu0 0.0
    %1079 = vmatpush1.msra.mxu0 0.0
    %1080 = vmatprep.subr.mxu0 0.0
    %1081 = vmatpush1.msra.mxu0 0.0
    %1082 = vmatprep.subr.mxu0 0.0
    %1083 = vmatpush1.msra.mxu0 0.0
    %1084 = vmatprep.subr.mxu0 0.0
    %1085 = vmatpush1.msra.mxu0 0.0
    %1086 = vmatprep.subr.mxu0 0.0
    %1087 = vmatpush1.msra.mxu0 0.0
    %1088 = vmatprep.subr.mxu0 0.0
    %1089 = vmatpush1.msra.mxu0 0.0
    %1090 = vmatprep.subr.mxu0 0.0
    %1091 = vmatpush1.msra.mxu0 0.0
    %1092 = vmatprep.subr.mxu0 0.0
    %1093 = vmatpush1.msra.mxu0 0.0
    %1094 = vmatprep.subr.mxu0 0.0
    %1095 = vmatpush1.msra.mxu0 0.0
    %1096 = vmatprep.subr.mxu0 0.0
    %1097 = vmatpush1.msra.mxu0 0.0
    %1098 = vmatprep.subr.mxu0 0.0
    %1099 = vmatpush1.msra.mxu0 0.0
    %1100 = vmatprep.subr.mxu0 0.0
    %1101 = vmatpush1.msra.mxu0 0.0
    %1102 = vmatprep.subr.mxu0 0.0
    %1103 = vmatpush1.msra.mxu0 0.0
    %1104 = vmatprep.subr.mxu0 0.0
    %1105 = vmatpush1.msra.mxu0 0.0
    %1106 = vmatprep.subr.mxu0 0.0
    %1107 = vmatpush1.msra.mxu0 0.0
    %1108 = vmatprep.subr.mxu0 0.0
    %1109 = vmatpush1.msra.mxu0 0.0
    %1110 = vmatprep.subr.mxu0 0.0
    %1111 = vmatpush1.msra.mxu0 0.0
    %1112 = vmatprep.subr.mxu0 0.0
    %1113 = vmatpush1.msra.mxu0 0.0
    %1114 = vmatprep.subr.mxu0 0.0
    %1115 = vmatpush1.msra.mxu0 0.0
    %1116 = vmatprep.subr.mxu0 0.0
    %1117 = vmatpush1.msra.mxu0 0.0
    %1118 = vmatprep.subr.mxu0 0.0
    %1119 = vmatpush1.msra.mxu0 0.0
    %1120 = vmatprep.subr.mxu0 0.0
    %1121 = vmatpush1.msra.mxu0 0.0
    %1122 = vmatprep.mubr.f32.mxu0 0.0
    %1123 = vmatmul.mubr.f32.gmra.mrb[0].mxu0 %v1052
    %v1124 = vpop.f32.mrb[0].mxu0
    %v1125 = vadd.f32 0.0, %v1124
    %v1126 = vpop.f32.mrb[0].mxu0
    %1127 = vdwg.mxu0
    %v1128 = vld [vmem:[#allocation7] sm:$0xff]
    %v1129 = vld [vmem:[#allocation7 + $0x8] sm:$0xff]
    %v1130 = vld [vmem:[#allocation7 + $0x10] sm:$0xff]
    %v1131 = vld [vmem:[#allocation7 + $0x18] sm:$0xff]
    %v1132 = vld [vmem:[#allocation7 + $0x20] sm:$0xff]
    %v1133 = vld [vmem:[#allocation7 + $0x28] sm:$0xff]
    %v1134 = vld [vmem:[#allocation7 + $0x30] sm:$0xff]
    %v1135 = vld [vmem:[#allocation7 + $0x38] sm:$0xff]
    %v1136 = vld [vmem:[#allocation7 + $0x40] sm:$0xff]
    %v1137 = vld [vmem:[#allocation7 + $0x48] sm:$0xff]
    %v1138 = vld [vmem:[#allocation7 + $0x50] sm:$0xff]
    %v1139 = vld [vmem:[#allocation7 + $0x58] sm:$0xff]
    %v1140 = vld [vmem:[#allocation7 + $0x60] sm:$0xff]
    %v1141 = vld [vmem:[#allocation7 + $0x68] sm:$0xff]
    %v1142 = vld [vmem:[#allocation7 + $0x70] sm:$0xff]
    %v1143 = vld [vmem:[#allocation7 + $0x78] sm:$0xff]
    %v1144 = vld [vmem:[#allocation7 + $0x80] sm:$0xff]
    %v1145 = vld [vmem:[#allocation7 + $0x88] sm:$0xff]
    %v1146 = vld [vmem:[#allocation7 + $0x90] sm:$0xff]
    %v1147 = vld [vmem:[#allocation7 + $0x98] sm:$0xff]
    %v1148 = vld [vmem:[#allocation7 + $0xa0] sm:$0xff]
    %v1149 = vld [vmem:[#allocation7 + $0xa8] sm:$0xff]
    %v1150 = vld [vmem:[#allocation7 + $0xb0] sm:$0xff]
    %v1151 = vld [vmem:[#allocation7 + $0xb8] sm:$0xff]
    %v1152 = vld [vmem:[#allocation7 + $0xc0] sm:$0xff]
    %v1153 = vld [vmem:[#allocation7 + $0xc8] sm:$0xff]
    %v1154 = vld [vmem:[#allocation7 + $0xd0] sm:$0xff]
    %v1155 = vld [vmem:[#allocation7 + $0xd8] sm:$0xff]
    %v1156 = vld [vmem:[#allocation7 + $0xe0] sm:$0xff]
    %v1157 = vld [vmem:[#allocation7 + $0xe8] sm:$0xff]
    %v1158 = vld [vmem:[#allocation7 + $0xf0] sm:$0xff]
    %v1159 = vld [vmem:[#allocation7 + $0xf8] sm:$0xff]
    %v1160 = vld [vmem:[#allocation7 + $0x100] sm:$0xff]
    %v1161 = vld [vmem:[#allocation7 + $0x108] sm:$0xff]
    %v1162 = vld [vmem:[#allocation7 + $0x110] sm:$0xff]
    %v1163 = vld [vmem:[#allocation7 + $0x118] sm:$0xff]
    %v1164 = vld [vmem:[#allocation7 + $0x120] sm:$0xff]
    %v1165 = vld [vmem:[#allocation7 + $0x128] sm:$0xff]
    %v1166 = vld [vmem:[#allocation7 + $0x130] sm:$0xff]
    %v1167 = vld [vmem:[#allocation7 + $0x138] sm:$0xff]
    %v1168 = vld [vmem:[#allocation7 + $0x140] sm:$0xff]
    %v1169 = vld [vmem:[#allocation7 + $0x148] sm:$0xff]
    %v1170 = vld [vmem:[#allocation7 + $0x150] sm:$0xff]
    %v1171 = vld [vmem:[#allocation7 + $0x158] sm:$0xff]
    %v1172 = vld [vmem:[#allocation7 + $0x160] sm:$0xff]
    %v1173 = vld [vmem:[#allocation7 + $0x168] sm:$0xff]
    %v1174 = vld [vmem:[#allocation7 + $0x170] sm:$0xff]
    %v1175 = vld [vmem:[#allocation7 + $0x178] sm:$0xff]
    %v1176 = vld [vmem:[#allocation7 + $0x180] sm:$0xff]
    %v1177 = vld [vmem:[#allocation7 + $0x188] sm:$0xff]
    %v1178 = vld [vmem:[#allocation7 + $0x190] sm:$0xff]
    %v1179 = vld [vmem:[#allocation7 + $0x198] sm:$0xff]
    %v1180 = vld [vmem:[#allocation7 + $0x1a0] sm:$0xff]
    %v1181 = vld [vmem:[#allocation7 + $0x1a8] sm:$0xff]
    %v1182 = vld [vmem:[#allocation7 + $0x1b0] sm:$0xff]
    %v1183 = vld [vmem:[#allocation7 + $0x1b8] sm:$0xff]
    %v1184 = vld [vmem:[#allocation7 + $0x1c0] sm:$0xff]
    %v1185 = vld [vmem:[#allocation7 + $0x1c8] sm:$0xff]
    %v1186 = vld [vmem:[#allocation7 + $0x1d0] sm:$0xff]
    %v1187 = vld [vmem:[#allocation7 + $0x1d8] sm:$0xff]
    %v1188 = vld [vmem:[#allocation7 + $0x1e0] sm:$0xff]
    %v1189 = vld [vmem:[#allocation7 + $0x1e8] sm:$0xff]
    %v1190 = vld [vmem:[#allocation7 + $0x1f0] sm:$0xff]
    %v1191 = vld [vmem:[#allocation7 + $0x1f8] sm:$0xff]
    %1192 = vmatprep.subr.mxu0 %v1161
    %1193 = vmatpush1.msra.mxu0 %v1160
    %1194 = vmatprep.subr.mxu0 %v1163
    %1195 = vmatpush1.msra.mxu0 %v1162
    %1196 = vmatprep.subr.mxu0 %v1165
    %1197 = vmatpush1.msra.mxu0 %v1164
    %1198 = vmatprep.subr.mxu0 %v1167
    %1199 = vmatpush1.msra.mxu0 %v1166
    %1200 = vmatprep.subr.mxu0 %v1169
    %1201 = vmatpush1.msra.mxu0 %v1168
    %1202 = vmatprep.subr.mxu0 %v1171
    %1203 = vmatpush1.msra.mxu0 %v1170
    %1204 = vmatprep.subr.mxu0 %v1173
    %1205 = vmatpush1.msra.mxu0 %v1172
    %1206 = vmatprep.subr.mxu0 %v1175
    %1207 = vmatpush1.msra.mxu0 %v1174
    %1208 = vmatprep.subr.mxu0 %v1177
    %1209 = vmatpush1.msra.mxu0 %v1176
    %1210 = vmatprep.subr.mxu0 %v1179
    %1211 = vmatpush1.msra.mxu0 %v1178
    %1212 = vmatprep.subr.mxu0 %v1181
    %1213 = vmatpush1.msra.mxu0 %v1180
    %1214 = vmatprep.subr.mxu0 %v1183
    %1215 = vmatpush1.msra.mxu0 %v1182
    %1216 = vmatprep.subr.mxu0 %v1185
    %1217 = vmatpush1.msra.mxu0 %v1184
    %1218 = vmatprep.subr.mxu0 %v1187
    %1219 = vmatpush1.msra.mxu0 %v1186
    %1220 = vmatprep.subr.mxu0 %v1189
    %1221 = vmatpush1.msra.mxu0 %v1188
    %1222 = vmatprep.subr.mxu0 %v1191
    %1223 = vmatpush1.msra.mxu0 %v1190
    %1224 = vmatprep.subr.mxu0 0.0
    %1225 = vmatpush1.msra.mxu0 0.0
    %1226 = vmatprep.subr.mxu0 0.0
    %1227 = vmatpush1.msra.mxu0 0.0
    %1228 = vmatprep.subr.mxu0 0.0
    %1229 = vmatpush1.msra.mxu0 0.0
    %1230 = vmatprep.subr.mxu0 0.0
    %1231 = vmatpush1.msra.mxu0 0.0
    %1232 = vmatprep.subr.mxu0 0.0
    %1233 = vmatpush1.msra.mxu0 0.0
    %1234 = vmatprep.subr.mxu0 0.0
    %1235 = vmatpush1.msra.mxu0 0.0
    %1236 = vmatprep.subr.mxu0 0.0
    %1237 = vmatpush1.msra.mxu0 0.0
    %1238 = vmatprep.subr.mxu0 0.0
    %1239 = vmatpush1.msra.mxu0 0.0
    %1240 = vmatprep.subr.mxu0 0.0
    %1241 = vmatpush1.msra.mxu0 0.0
    %1242 = vmatprep.subr.mxu0 0.0
    %1243 = vmatpush1.msra.mxu0 0.0
    %1244 = vmatprep.subr.mxu0 0.0
    %1245 = vmatpush1.msra.mxu0 0.0
    %1246 = vmatprep.subr.mxu0 0.0
    %1247 = vmatpush1.msra.mxu0 0.0
    %1248 = vmatprep.subr.mxu0 0.0
    %1249 = vmatpush1.msra.mxu0 0.0
    %1250 = vmatprep.subr.mxu0 0.0
    %1251 = vmatpush1.msra.mxu0 0.0
    %1252 = vmatprep.subr.mxu0 0.0
    %1253 = vmatpush1.msra.mxu0 0.0
    %1254 = vmatprep.subr.mxu0 0.0
    %1255 = vmatpush1.msra.mxu0 0.0
    %1256 = vmatprep.mubr.f32.mxu0 0.0
    %1257 = vmatmul.mubr.f32.gmra.mrb[0].mxu0 %v922
    %v1258 = vpop.f32.mrb[0].mxu0
    %v1259 = vadd.f32 0.0, %v1258
    %v1260 = vpop.f32.mrb[0].mxu0
    %v1261 = vadd.f32 0.0, %v1260
    %1262 = vdwg.mxu0
    %1263 = vmatprep.subr.mxu0 %v1129
    %1264 = vmatpush1.msra.mxu0 %v1128
    %1265 = vmatprep.subr.mxu0 %v1131
    %1266 = vmatpush1.msra.mxu0 %v1130
    %1267 = vmatprep.subr.mxu0 %v1133
    %1268 = vmatpush1.msra.mxu0 %v1132
    %1269 = vmatprep.subr.mxu0 %v1135
    %1270 = vmatpush1.msra.mxu0 %v1134
    %1271 = vmatprep.subr.mxu0 %v1137
    %1272 = vmatpush1.msra.mxu0 %v1136
    %1273 = vmatprep.subr.mxu0 %v1139
    %1274 = vmatpush1.msra.mxu0 %v1138
    %1275 = vmatprep.subr.mxu0 %v1141
    %1276 = vmatpush1.msra.mxu0 %v1140
    %1277 = vmatprep.subr.mxu0 %v1143
    %1278 = vmatpush1.msra.mxu0 %v1142
    %1279 = vmatprep.subr.mxu0 %v1145
    %1280 = vmatpush1.msra.mxu0 %v1144
    %1281 = vmatprep.subr.mxu0 %v1147
    %1282 = vmatpush1.msra.mxu0 %v1146
    %1283 = vmatprep.subr.mxu0 %v1149
    %1284 = vmatpush1.msra.mxu0 %v1148
    %1285 = vmatprep.subr.mxu0 %v1151
    %1286 = vmatpush1.msra.mxu0 %v1150
    %1287 = vmatprep.subr.mxu0 %v1153
    %1288 = vmatpush1.msra.mxu0 %v1152
    %1289 = vmatprep.subr.mxu0 %v1155
    %1290 = vmatpush1.msra.mxu0 %v1154
    %1291 = vmatprep.subr.mxu0 %v1157
    %1292 = vmatpush1.msra.mxu0 %v1156
    %1293 = vmatprep.subr.mxu0 %v1159
    %1294 = vmatpush1.msra.mxu0 %v1158
    %1295 = vmatprep.subr.mxu0 0.0
    %1296 = vmatpush1.msra.mxu0 0.0
    %1297 = vmatprep.subr.mxu0 0.0
    %1298 = vmatpush1.msra.mxu0 0.0
    %1299 = vmatprep.subr.mxu0 0.0
    %1300 = vmatpush1.msra.mxu0 0.0
    %1301 = vmatprep.subr.mxu0 0.0
    %1302 = vmatpush1.msra.mxu0 0.0
    %1303 = vmatprep.subr.mxu0 0.0
    %1304 = vmatpush1.msra.mxu0 0.0
    %1305 = vmatprep.subr.mxu0 0.0
    %1306 = vmatpush1.msra.mxu0 0.0
    %1307 = vmatprep.subr.mxu0 0.0
    %1308 = vmatpush1.msra.mxu0 0.0
    %1309 = vmatprep.subr.mxu0 0.0
    %1310 = vmatpush1.msra.mxu0 0.0
    %1311 = vmatprep.subr.mxu0 0.0
    %1312 = vmatpush1.msra.mxu0 0.0
    %1313 = vmatprep.subr.mxu0 0.0
    %1314 = vmatpush1.msra.mxu0 0.0
    %1315 = vmatprep.subr.mxu0 0.0
    %1316 = vmatpush1.msra.mxu0 0.0
    %1317 = vmatprep.subr.mxu0 0.0
    %1318 = vmatpush1.msra.mxu0 0.0
    %1319 = vmatprep.subr.mxu0 0.0
    %1320 = vmatpush1.msra.mxu0 0.0
    %1321 = vmatprep.subr.mxu0 0.0
    %1322 = vmatpush1.msra.mxu0 0.0
    %1323 = vmatprep.subr.mxu0 0.0
    %1324 = vmatpush1.msra.mxu0 0.0
    %1325 = vmatprep.subr.mxu0 0.0
    %1326 = vmatpush1.msra.mxu0 0.0
    %1327 = vmatprep.mubr.f32.mxu0 0.0
    %1328 = vmatmul.mubr.f32.gmra.mrb[0].mxu0 %v1125
    %v1329 = vpop.f32.mrb[0].mxu0
    %v1330 = vadd.f32 %v1259, %v1329
    %v1331 = vpop.f32.mrb[0].mxu0
    %v1332 = vadd.f32 %v1261, %v1331
    %1333 = vdwg.mxu0
    %s1334 = scalar_lea.vmem %s6, 1
    %v1335 = vld [vmem:[%s1334] ss:$4 sm:$0x3]
    %v1337 = vlaneseq
    %v1338 = vshrl.u32 %v1337, 7
    %v1339 = vsub.s32 0, %v1338
    %v1340 = vrot.slane %v1335, %v1339
    %v1341 = vlaneseq
    %v1342 = vshrl.u32 %v1341, 7
    %v1343 = vsub.s32 1, %v1342
    %v1344 = vrot.slane %v1335, %v1343
    %v1347 = vadd.f32 %v1330, %v1340
    %v1348 = vadd.f32 %v1332, %v1344
    %v1349 = vsel %vm1054, %v1347, 0.0
    %v1350 = vrot.slane %v1349, 4
    %v1351 = vadd.f32 %v1349, %v1350
    %v1352 = vrot.slane %v1351, 2
    %v1353 = vadd.f32 %v1351, %v1352
    %v1354 = vrot.slane %v1353, 1
    %v1355 = vadd.f32 %v1353, %v1354
    %v1356 = vsel %vm1054, %v1348, 0.0
    %v1357 = vrot.slane %v1356, 4
    %v1358 = vadd.f32 %v1356, %v1357
    %v1359 = vrot.slane %v1358, 2
    %v1360 = vadd.f32 %v1358, %v1359
    %v1361 = vrot.slane %v1360, 1
    %v1362 = vadd.f32 %v1360, %v1361
    %v1363 = vrcp.pop 2.0
    %v1364 = vmul.f32 %v1355, %v1363
    %v1365 = vmul.f32 %v1362, %v1363
    %v1366 = vsub.f32 %v1347, %v1364
    %v1367 = vsub.f32 %v1348, %v1365
    %v1368 = vmul.f32 %v1366, %v1366
    %v1369 = vmul.f32 %v1367, %v1367
    %v1370 = vsel %vm1054, %v1368, 0.0
    %v1371 = vrot.slane %v1370, 4
    %v1372 = vadd.f32 %v1370, %v1371
    %v1373 = vrot.slane %v1372, 2
    %v1374 = vadd.f32 %v1372, %v1373
    %v1375 = vrot.slane %v1374, 1
    %v1376 = vadd.f32 %v1374, %v1375
    %v1377 = vsel %vm1054, %v1369, 0.0
    %v1378 = vrot.slane %v1377, 4
    %v1379 = vadd.f32 %v1377, %v1378
    %v1380 = vrot.slane %v1379, 2
    %v1381 = vadd.f32 %v1379, %v1380
    %v1382 = vrot.slane %v1381, 1
    %v1383 = vadd.f32 %v1381, %v1382
    %v1384 = vmul.f32 %v1376, %v1363
    %v1385 = vmul.f32 %v1383, %v1363
    %v1386 = vadd.f32 %v1384, 1e-05
    %v1387 = vadd.f32 %v1385, 1e-05
    %v1388 = vrsqrt.pop %v1386
    %v1389 = vrsqrt.pop %v1387
    %v1390 = vmul.f32 %v1366, %v1388
    %v1391 = vmul.f32 %v1367, %v1389
    %s1392 = scalar_lea.vmem %s6, 2
    %v1393 = vld [vmem:[%s1392] ss:$4 sm:$0x3]
    %v1395 = vlaneseq
    %v1396 = vshrl.u32 %v1395, 7
    %v1397 = vsub.s32 0, %v1396
    %v1398 = vrot.slane %v1393, %v1397
    %v1399 = vlaneseq
    %v1400 = vshrl.u32 %v1399, 7
    %v1401 = vsub.s32 1, %v1400
    %v1402 = vrot.slane %v1393, %v1401
    %v1405 = vmul.f32 %v1390, %v1398
    %v1406 = vmul.f32 %v1391, %v1402
    %s1407 = scalar_lea.vmem %s6, 3
    %v1408 = vld [vmem:[%s1407] ss:$4 sm:$0x3]
    %v1410 = vlaneseq
    %v1411 = vshrl.u32 %v1410, 7
    %v1412 = vsub.s32 0, %v1411
    %v1413 = vrot.slane %v1408, %v1412
    %v1414 = vlaneseq
    %v1415 = vshrl.u32 %v1414, 7
    %v1416 = vsub.s32 1, %v1415
    %v1417 = vrot.slane %v1408, %v1416
    %v1420 = vadd.f32 %v1405, %v1413
    %v1421 = vadd.f32 %v1406, %v1417
    %v1422 = vmax.f32 %v1420, 0.0
    %v1423 = vmax.f32 %v1421, 0.0
    %v1426 = vcombine.low %v1422, %v1423
    %v1428 = vunpack.c.l.s4 1983009808
    %v1429 = vunpack.c.0.s8 %v1428
    %v1430 = vlaneseq
    %v1431 = vshrl.u32 %v1430, 7
    %v1432 = vsub.s32 %v1429, %v1431
    %v1433 = vrot.slane %v1426, %v1432
    %1435 = vst [vmem:[#allocation12] sm:$0xf] %v1433
    // Predicated region
    $region42: #{tpu_custom_call.1} parent=1 // pred_check
      _
    $region43: #{tpu_custom_call.1} parent=1 // pred_check_branch
      %1437 = sbr.rel (0) target = $region45
    $region44: #{tpu_custom_call.1} parent=1 // pred_region
      %s1439 = ssub.s32 4096, 4096
      %1440 = vsyncadd [#allocation4], %s1439
      %s1441 = sshll.u32 [#allocation9], 4
      %s1442 = int_to_ptr.vmem [resolvable:$true] %s1441
      %1447 = dma.vmem_to_hbm [thread:$0]  %s1442, 4096, %s7, [#allocation4], 128, 128, 8
    $region45: #{tpu_custom_call.1} parent=1 // pred_fallthru
      _
    // Predicated region
    $region46: #{tpu_custom_call.1} parent=1 // pred_check
      _
    $region47: #{tpu_custom_call.1} parent=1 // pred_check_branch
      %1449 = sbr.rel (0) target = $region49
    $region48: #{tpu_custom_call.1} parent=1 // pred_region
      %s1451 = ssub.s32 256, 256
      %1452 = vsyncadd [#allocation11], %s1451
      %s1453 = sshll.u32 [#allocation10], 4
      %s1454 = int_to_ptr.vmem [resolvable:$true] %s1453
      %1459 = dma.vmem_to_hbm [thread:$0]  %s1454, 256, %s8, [#allocation11], 128, 128, 8
    $region49: #{tpu_custom_call.1} parent=1 // pred_fallthru
      _
    // Predicated region
    $region50: #{tpu_custom_call.1} parent=1 // pred_check
      _
    $region51: #{tpu_custom_call.1} parent=1 // pred_check_branch
      %1461 = sbr.rel (0) target = $region53
    $region52: #{tpu_custom_call.1} parent=1 // pred_region
      %s1463 = ssub.s32 64, 64
      %1464 = vsyncadd [#allocation11], %s1463
      %s1466 = sshll.u32 [#allocation12], 4
      %s1467 = int_to_ptr.vmem [resolvable:$true] %s1466
      %1469 = dma.vmem_to_hbm [thread:$0]  %s1467, 64, %s9, [#allocation11]
    $region53: #{tpu_custom_call.1} parent=1 // pred_fallthru
      _
    // Predicated region
    $region54: #{tpu_custom_call.1} parent=1 // pred_check
      _
    $region55: #{tpu_custom_call.1} parent=1 // pred_check_branch
      %1471 = sbr.rel (0) target = $region57
    $region56: #{tpu_custom_call.1} parent=1 // pred_region
      %1472 = dma.done [#allocation4], 4096
    $region57: #{tpu_custom_call.1} parent=1 // pred_fallthru
      _
    // Predicated region
    $region58: #{tpu_custom_call.1} parent=1 // pred_check
      _
    $region59: #{tpu_custom_call.1} parent=1 // pred_check_branch
      %1474 = sbr.rel (0) target = $region61
    $region60: #{tpu_custom_call.1} parent=1 // pred_region
      %1475 = dma.done [#allocation11], 256
    $region61: #{tpu_custom_call.1} parent=1 // pred_fallthru
      _
    // Predicated region
    $region62: #{tpu_custom_call.1} parent=1 // pred_check
      _
    $region63: #{tpu_custom_call.1} parent=1 // pred_check_branch
      %1477 = sbr.rel (0) target = $region65
    $region64: #{tpu_custom_call.1} parent=1 // pred_region
      %1478 = dma.done [#allocation11], 64
    $region65: #{tpu_custom_call.1} parent=1 // pred_fallthru
      _
    %1479 = vsyncpa [#allocation3], 1
    %1480 = vsyncpa [#allocation8], 1
    %1481 = vsyncpa [#allocation4], 1
    %1482 = vsyncpa [#allocation11], 1
    %1483 = vsyncpa [#allocation5], 1

</llo_original>
